<compile_context>
chip_gen: v7x
topology: tpu7x:2x2x1
jax: 0.10.0
libtpu: 0.0.40
codegen_flags: <defaults>
</compile_context>

<pallas_src>
import functools

import jax
import jax.numpy as jnp
from jax.experimental import pallas as pl
from jax.experimental.pallas import tpu as pltpu


# ----------------------------------------------------------------------------
# helpers
# ----------------------------------------------------------------------------

def _round_up(x, m):
    return ((x + m - 1) // m) * m


def _pad2d(x, rows, cols):
    r = rows - x.shape[0]
    c = cols - x.shape[1]
    if r or c:
        x = jnp.pad(x, ((0, r), (0, c)))
    return x


# ----------------------------------------------------------------------------
# tiled matmul (+ bias + optional GELU), bf16 MXU operands, f32 accumulation
# ----------------------------------------------------------------------------

def _linear_kernel(*refs, act, nk, has_bias, trans_b):
    if has_bias:
        a_ref, w_ref, bias_ref, o_ref, acc_ref = refs
    else:
        a_ref, w_ref, o_ref, acc_ref = refs
        bias_ref = None
    k = pl.program_id(2)

    @pl.when(k == 0)
    def _():
        acc_ref[...] = jnp.zeros_like(acc_ref)

    a = a_ref[...]
    w = w_ref[...]
    if trans_b:  # a[M,K] @ w[N,K]^T  (contract last dims)
        acc_ref[...] += jax.lax.dot_general(
            a, w, (((1,), (1,)), ((), ())), preferred_element_type=jnp.float32)
    else:
        acc_ref[...] += jnp.dot(a, w, preferred_element_type=jnp.float32)

    @pl.when(k == nk - 1)
    def _():
        y = acc_ref[...]
        if has_bias:
            y = y + bias_ref[...]
        if act == "gelu":
            y = jax.nn.gelu(y, approximate=True)
        o_ref[...] = y


def linear(x, w, b=None, act="none", trans_b=False, tm=256, tn=256, tk=512):
    """x: [M, K] f32.  w: [K, N] f32 (or [N, K] if trans_b).  Returns [M, N] f32."""
    M, K = x.shape
    N = w.shape[0] if trans_b else w.shape[1]
    tm = min(tm, _round_up(M, 8))
    tn = min(tn, _round_up(N, 128))
    tk = min(tk, _round_up(K, 128))
    Mp, Np, Kp = _round_up(M, tm), _round_up(N, tn), _round_up(K, tk)
    nk = Kp // tk

    xp = _pad2d(x, Mp, Kp).astype(jnp.bfloat16)
    if trans_b:
        wp = _pad2d(w, Np, Kp).astype(jnp.bfloat16)
        w_spec = pl.BlockSpec((tn, tk), lambda i, j, k: (j, k))
    else:
        wp = _pad2d(w, Kp, Np).astype(jnp.bfloat16)
        w_spec = pl.BlockSpec((tk, tn), lambda i, j, k: (k, j))

    has_bias = b is not None
    in_specs = [pl.BlockSpec((tm, tk), lambda i, j, k: (i, k)), w_spec]
    args = [xp, wp]
    if has_bias:
        bp = jnp.pad(b.astype(jnp.float32), (0, Np - N)).reshape(1, Np)
        in_specs.append(pl.BlockSpec((1, tn), lambda i, j, k: (0, j)))
        args.append(bp)

    out = pl.pallas_call(
        functools.partial(_linear_kernel, act=act, nk=nk,
                          has_bias=has_bias, trans_b=trans_b),
        out_shape=jax.ShapeDtypeStruct((Mp, Np), jnp.float32),
        grid=(Mp // tm, Np // tn, nk),
        in_specs=in_specs,
        out_specs=pl.BlockSpec((tm, tn), lambda i, j, k: (i, j)),
        scratch_shapes=[pltpu.VMEM((tm, tn), jnp.float32)],
        compiler_params=pltpu.CompilerParams(
            dimension_semantics=("parallel", "parallel", "arbitrary"),
            vmem_limit_bytes=48 * 1024 * 1024),
    )(*args)
    return out[:M, :N]


# ----------------------------------------------------------------------------
# multi-head attention: one grid step per batch element, heads packed in lane dim
# ----------------------------------------------------------------------------

def _attn_kernel(q_ref, k_ref, v_ref, bias_ref, o_ref, *, H, scale):
    D = q_ref.shape[-1]
    Dh = D // H
    q = q_ref[0]          # [Sq, D] bf16
    k = k_ref[0]          # [Sk, D] bf16
    v = v_ref[0]          # [Sk, D] bf16
    bias = bias_ref[0]    # [Sq, Sk] f32
    dn = (((1,), (1,)), ((), ()))     # contract last dims  (q @ k^T)
    outs = []
    for h in range(H):    # H is a small static constant -> fully unrolled
        lo, hi = h * Dh, (h + 1) * Dh
        qh, kh, vh = q[:, lo:hi], k[:, lo:hi], v[:, lo:hi]
        s = jax.lax.dot_general(qh, kh, dn,
                                preferred_element_type=jnp.float32) * scale + bias
        m = jnp.max(s, axis=-1, keepdims=True)
        p = jnp.exp(s - m)
        denom = jnp.sum(p, axis=-1, keepdims=True)
        o = jnp.dot(p.astype(vh.dtype), vh, preferred_element_type=jnp.float32)
        outs.append(o * pl.reciprocal(denom, approx=True))
    o_ref[0] = jnp.concatenate(outs, axis=-1)     # single lane-dense store


def attention(q, k, v, bias, H):
    """q: [B, Sq, D], k/v: [B, Sk, D], bias: [B, Sq, Sk] additive mask -> [B, Sq, D]."""
    # TODO(synk): for long sequences tile Sk with an online-softmax (flash-style)
    # accumulator; unnecessary at these toy sequence lengths.
    B, Sq, D = q.shape
    Sk = k.shape[1]
    scale = 1.0 / float(D // H) ** 0.5
    return pl.pallas_call(
        functools.partial(_attn_kernel, H=H, scale=scale),
        out_shape=jax.ShapeDtypeStruct((B, Sq, D), jnp.float32),
        grid=(B,),
        in_specs=[
            pl.BlockSpec((1, Sq, D), lambda b: (b, 0, 0)),
            pl.BlockSpec((1, Sk, D), lambda b: (b, 0, 0)),
            pl.BlockSpec((1, Sk, D), lambda b: (b, 0, 0)),
            pl.BlockSpec((1, Sq, Sk), lambda b: (b, 0, 0)),
        ],
        out_specs=pl.BlockSpec((1, Sq, D), lambda b: (b, 0, 0)),
        compiler_params=pltpu.CompilerParams(dimension_semantics=("parallel",)),
    )(q.astype(jnp.bfloat16), k.astype(jnp.bfloat16), v.astype(jnp.bfloat16),
      bias.astype(jnp.float32))


# ----------------------------------------------------------------------------
# layer norm with fused residual add
# ----------------------------------------------------------------------------

def _ln_kernel(*refs, has_res):
    if has_res:
        x_ref, r_ref, g_ref, b_ref, o_ref = refs
        x = x_ref[...] + r_ref[...]
    else:
        x_ref, g_ref, b_ref, o_ref = refs
        x = x_ref[...]
    mu = jnp.mean(x, axis=-1, keepdims=True)
    xc = x - mu
    var = jnp.mean(xc * xc, axis=-1, keepdims=True)
    o_ref[...] = xc * jax.lax.rsqrt(var + 1e-5) * g_ref[...] + b_ref[...]


def layer_norm(x2d, g, b, res2d=None, tm=512):
    """LayerNorm(x [+ res]) over the last dim.  x2d: [M, D] f32."""
    M, D = x2d.shape
    tm = min(tm, _round_up(M, 8))
    Mp = _round_up(M, tm)
    has_res = res2d is not None

    args = [_pad2d(x2d, Mp, D)]
    in_specs = [pl.BlockSpec((tm, D), lambda i: (i, 0))]
    if has_res:
        args.append(_pad2d(res2d, Mp, D))
        in_specs.append(pl.BlockSpec((tm, D), lambda i: (i, 0)))
    args += [g.reshape(1, D), b.reshape(1, D)]
    in_specs += [pl.BlockSpec((1, D), lambda i: (0, 0)),
                 pl.BlockSpec((1, D), lambda i: (0, 0))]

    out = pl.pallas_call(
        functools.partial(_ln_kernel, has_res=has_res),
        out_shape=jax.ShapeDtypeStruct((Mp, D), jnp.float32),
        grid=(Mp // tm,),
        in_specs=in_specs,
        out_specs=pl.BlockSpec((tm, D), lambda i: (i, 0)),
        compiler_params=pltpu.CompilerParams(dimension_semantics=("parallel",)),
    )(*args)
    return out[:M]


# ----------------------------------------------------------------------------
# label-smoothed cross-entropy + token accuracy, tiled over the vocab axis
# ----------------------------------------------------------------------------

def _ce_kernel(labels_ref, logits_ref, loss_ref, acc_ref,
               m_sc, l_sc, slog_sc, pick_sc, bval_sc, bidx_sc,
               *, eps, n_valid, v_valid, tv):
    j = pl.program_id(0)

    @pl.when(j == 0)
    def _():
        m_sc[...] = jnp.full_like(m_sc, -1e30)
        l_sc[...] = jnp.zeros_like(l_sc)
        slog_sc[...] = jnp.zeros_like(slog_sc)
        pick_sc[...] = jnp.zeros_like(pick_sc)
        bval_sc[...] = jnp.full_like(bval_sc, -1e30)
        bidx_sc[...] = jnp.full_like(bidx_sc, -1.0)

    logits = logits_ref[...]                            # [Nr, tv] f32
    labels = labels_ref[...]                            # [Nr, 1]  int32
    col = jax.lax.broadcasted_iota(jnp.int32, logits.shape, 1) + j * tv
    col_valid = col < v_valid
    lmask = jnp.where(col_valid, logits, -1e30)

    # online logsumexp
    chunk_max = jnp.max(lmask, axis=-1, keepdims=True)
    m_new = jnp.maximum(m_sc[...], chunk_max)
    l_sc[...] = l_sc[...] * jnp.exp(m_sc[...] - m_new) + \
        jnp.sum(jnp.exp(lmask - m_new), axis=-1, keepdims=True)
    m_sc[...] = m_new

    # sum of logits over valid classes (label-smoothing term)
    slog_sc[...] += jnp.sum(jnp.where(col_valid, logits, 0.0), axis=-1, keepdims=True)

    # logit at the label (the label falls in exactly one vocab chunk)
    onehot = (col == labels) & col_valid
    pick_sc[...] += jnp.sum(jnp.where(onehot, logits, 0.0), axis=-1, keepdims=True)

    # running argmax (first-max index; chunks visited in increasing column order)
    colf = col.astype(jnp.float32)
    idx_local = jnp.min(jnp.where(lmask == chunk_max, colf, 1e30),
                        axis=-1, keepdims=True)
    better = chunk_max > bval_sc[...]
    bidx_sc[...] = jnp.where(better, idx_local, bidx_sc[...])
    bval_sc[...] = jnp.where(better, chunk_max, bval_sc[...])

    @pl.when(j == pl.num_programs(0) - 1)
    def _():
        lse = m_sc[...] + jnp.log(l_sc[...])
        nll = lse - pick_sc[...]                               # -log p(label)
        smooth = lse - slog_sc[...] / jnp.float32(v_valid)     # -mean(log p)
        per_row = (1.0 - eps) * nll + eps * smooth             # [Nr, 1]
        row = jax.lax.broadcasted_iota(jnp.int32, per_row.shape, 0)
        rmask = (row < n_valid).astype(jnp.float32)
        inv_n = 1.0 / jnp.float32(n_valid)
        loss_ref[...] = jnp.sum(per_row * rmask, axis=0, keepdims=True) * inv_n
        correct = (bidx_sc[...] == labels.astype(jnp.float32)).astype(jnp.float32)
        acc_ref[...] = jnp.sum(correct * rmask, axis=0, keepdims=True) * inv_n


def ce_loss_and_acc(logits2d, labels1d, eps, tv=512):
    """PyTorch-style label-smoothed CE (mean over all rows, matching the reference,
    which applies no pad masking) plus argmax==label accuracy."""
    N, V = logits2d.shape
    Nr = _round_up(N, 8)
    tv = min(tv, _round_up(V, 128))
    Vp = _round_up(V, tv)
    lg = _pad2d(logits2d, Nr, Vp)
    lb = jnp.pad(labels1d.astype(jnp.int32), (0, Nr - N)).reshape(Nr, 1)
    loss, acc = pl.pallas_call(
        functools.partial(_ce_kernel, eps=eps, n_valid=N, v_valid=V, tv=tv),
        out_shape=(jax.ShapeDtypeStruct((1, 1), jnp.float32),
                   jax.ShapeDtypeStruct((1, 1), jnp.float32)),
        grid=(Vp // tv,),
        in_specs=[pl.BlockSpec((Nr, 1), lambda j: (0, 0)),
                  pl.BlockSpec((Nr, tv), lambda j: (0, j))],
        out_specs=(pl.BlockSpec((1, 1), lambda j: (0, 0)),
                   pl.BlockSpec((1, 1), lambda j: (0, 0))),
        scratch_shapes=[pltpu.VMEM((Nr, 1), jnp.float32)] * 6,
        compiler_params=pltpu.CompilerParams(dimension_semantics=("arbitrary",)),
    )(lb, lg)
    return loss[0, 0], acc[0, 0]


# ----------------------------------------------------------------------------
# BART blocks built on the Pallas kernels
# ----------------------------------------------------------------------------

def self_attention_block(x, bias, p, H):
    B, S, D = x.shape
    qkv = linear(x.reshape(-1, D), p["wqkv"], p["bqkv"]).reshape(B, S, 3 * D)
    q, k, v = qkv[..., :D], qkv[..., D:2 * D], qkv[..., 2 * D:]
    o = attention(q, k, v, bias, H)
    return linear(o.reshape(-1, D), p["wo"], p["bo"]).reshape(B, S, D)


def cross_attention_block(x_q, x_kv, bias, p, H):
    B, Sq, D = x_q.shape
    Sk = x_kv.shape[1]
    q = linear(x_q.reshape(-1, D), p["wq"], p["bq"]).reshape(B, Sq, D)
    kv = linear(x_kv.reshape(-1, D), p["wkv"], p["bkv"]).reshape(B, Sk, 2 * D)
    k, v = kv[..., :D], kv[..., D:]
    o = attention(q, k, v, bias, H)
    return linear(o.reshape(-1, D), p["wo"], p["bo"]).reshape(B, Sq, D)


def ffn_block(x, lyr):
    B, S, D = x.shape
    h = linear(x.reshape(-1, D), lyr["fc1_w"], lyr["fc1_b"], act="gelu")
    h = linear(h, lyr["fc2_w"], lyr["fc2_b"])
    return h.reshape(B, S, D)


def encoder(params, tokens, mask, cfg):
    B, S = tokens.shape
    D, H = cfg["d_model"], cfg["heads"]
    x = params["shared"][tokens] + params["enc_pos"][2:2 + S][None, :, :]  # BART pos offset 2
    x = layer_norm(x.reshape(-1, D), *params["enc_ln_emb"]).reshape(B, S, D)
    bias = jnp.broadcast_to(
        (1.0 - mask.astype(jnp.float32))[:, None, :] * -1e9, (B, S, S))    # [B, S, S]
    for lyr in params["enc_layers"]:
        a = self_attention_block(x, bias, lyr["self_attn"], H)
        x = layer_norm(a.reshape(-1, D), *lyr["ln1"],
                       res2d=x.reshape(-1, D)).reshape(B, S, D)
        h = ffn_block(x, lyr)
        x = layer_norm(h.reshape(-1, D), *lyr["ln2"],
                       res2d=x.reshape(-1, D)).reshape(B, S, D)
    return x


def decoder(params, tokens, dec_mask, enc_out, enc_mask, cfg):
    B, T = tokens.shape
    Se = enc_out.shape[1]
    D, H = cfg["d_model"], cfg["heads"]
    x = params["shared"][tokens] + params["dec_pos"][2:2 + T][None, :, :]
    x = layer_norm(x.reshape(-1, D), *params["dec_ln_emb"]).reshape(B, T, D)
    causal = jnp.where(jnp.tril(jnp.ones((T, T), jnp.float32)) > 0, 0.0, -1e9)
    self_bias = causal[None, :, :] + \
        (1.0 - dec_mask.astype(jnp.float32))[:, None, :] * -1e9            # [B, T, T]
    cross_bias = jnp.broadcast_to(
        (1.0 - enc_mask.astype(jnp.float32))[:, None, :] * -1e9, (B, T, Se))
    for lyr in params["dec_layers"]:
        a = self_attention_block(x, self_bias, lyr["self_attn"], H)
        x = layer_norm(a.reshape(-1, D), *lyr["ln1"],
                       res2d=x.reshape(-1, D)).reshape(B, T, D)
        c = cross_attention_block(x, enc_out, cross_bias, lyr["cross_attn"], H)
        x = layer_norm(c.reshape(-1, D), *lyr["ln2"],
                       res2d=x.reshape(-1, D)).reshape(B, T, D)
        h = ffn_block(x, lyr)
        x = layer_norm(h.reshape(-1, D), *lyr["ln3"],
                       res2d=x.reshape(-1, D)).reshape(B, T, D)
    return x


def dbart_forward(params, enc_tokens, enc_mask, dec_tokens, dec_mask, labels, cfg):
    B, T = dec_tokens.shape
    D, V = cfg["d_model"], cfg["vocab"]
    enc_out = encoder(params, enc_tokens, enc_mask, cfg)
    dec_out = decoder(params, dec_tokens, dec_mask, enc_out, enc_mask, cfg)
    # classifier: weight tied to the shared embedding, used in its native [V, D]
    # layout via the trans_b matmul path (no transposed HBM copy), no bias.
    logits = linear(dec_out.reshape(-1, D), params["shared"],
                    trans_b=True).reshape(B, T, V)
    loss, acc = ce_loss_and_acc(logits.reshape(-1, V), labels.reshape(-1),
                                cfg["label_smoothing"])
    # stats kept as JAX scalars so the forward stays jittable (host sync happens outside)
    return {"loss": loss, "logits": logits, "stats": {"loss": loss, "acc": acc}}


# ----------------------------------------------------------------------------
# Deterministic parameter init (synthetic — replaces BartModel.from_pretrained)
# ----------------------------------------------------------------------------

def init_params(key, cfg):
    V, D, F = cfg["vocab"], cfg["d_model"], cfg["ffn"]
    keys = iter(jax.random.split(key, 64))

    def dense(shape):
        return jax.random.normal(next(keys), shape, jnp.float32) * 0.02

    def zeros(n):
        return jnp.zeros((n,), jnp.float32)

    def ln():
        return (jnp.ones((D,), jnp.float32), jnp.zeros((D,), jnp.float32))

    def self_attn():
        # fused Q|K|V projection: one [D, 3D] matmul per self-attention block
        return dict(wqkv=dense((D, 3 * D)), bqkv=zeros(3 * D),
                    wo=dense((D, D)), bo=zeros(D))

    def cross_attn():
        # fused K|V projection over the encoder output
        return dict(wq=dense((D, D)), bq=zeros(D),
                    wkv=dense((D, 2 * D)), bkv=zeros(2 * D),
                    wo=dense((D, D)), bo=zeros(D))

    def enc_layer():
        return dict(self_attn=self_attn(), ln1=ln(), ln2=ln(),
                    fc1_w=dense((D, F)), fc1_b=zeros(F),
                    fc2_w=dense((F, D)), fc2_b=zeros(D))

    def dec_layer():
        return dict(self_attn=self_attn(), cross_attn=cross_attn(),
                    ln1=ln(), ln2=ln(), ln3=ln(),
                    fc1_w=dense((D, F)), fc1_b=zeros(F),
                    fc2_w=dense((F, D)), fc2_b=zeros(D))

    return dict(
        shared=dense((V, D)),                       # tied token embedding / classifier weight
        enc_pos=dense((cfg["max_pos"] + 2, D)),
        dec_pos=dense((cfg["max_pos"] + 2, D)),
        enc_ln_emb=ln(),
        dec_ln_emb=ln(),
        enc_layers=[enc_layer() for _ in range(cfg["n_enc"])],
        dec_layers=[dec_layer() for _ in range(cfg["n_dec"])],
    )


# ----------------------------------------------------------------------------

if __name__ == "__main__":
    cfg = dict(vocab=128, d_model=32, heads=4, ffn=64,
               n_enc=2, n_dec=2, max_pos=64, label_smoothing=0.1)

    root = jax.random.PRNGKey(0)
    pkey, k1, k2, k3 = jax.random.split(root, 4)
    params = init_params(pkey, cfg)

    B, Se, Sd = 2, 8, 8
    encoder_tokens = jax.random.randint(k1, (B, Se), 0, cfg["vocab"], jnp.int32)
    decoder_tokens = jax.random.randint(k2, (B, Sd), 0, cfg["vocab"], jnp.int32)
    labels = jax.random.randint(k3, (B, Sd), 0, cfg["vocab"], jnp.int32)
    encoder_masks = jnp.array([[1] * Se, [1] * (Se - 2) + [0] * 2], jnp.int32)
    decoder_masks = jnp.array([[1] * Sd, [1] * (Sd - 1) + [0] * 1], jnp.int32)

    fwd = jax.jit(functools.partial(dbart_forward, cfg=cfg))
    out = fwd(params, encoder_tokens, encoder_masks,
              decoder_tokens, decoder_masks, labels)
    jax.block_until_ready(out["logits"])
    jax.block_until_ready(out["loss"])
    jax.block_until_ready(out["stats"]["acc"])
    # host-side stats dict (mirrors loss.item()/tokens_accuracy) built OUTSIDE the traced fwd
    _stats = {"loss": float(out["stats"]["loss"]), "acc": float(out["stats"]["acc"])}
    # TODO(synk): beam-search `response()` (decode-time path) is not part of forward, not ported.
    print("KERNEL_OK")
</pallas_src>

<mosaic_0001>
module attributes {stable_mosaic.version = 11 : i64} {
  func.func @_ln_kernel(%arg0: i32, %arg1: memref<16x32xf32, #tpu.memory_space<vmem>>, %arg2: memref<1x32xf32, #tpu.memory_space<vmem>>, %arg3: memref<1x32xf32, #tpu.memory_space<vmem>>, %arg4: memref<16x32xf32, #tpu.memory_space<vmem>>) attributes {dimension_semantics = [#tpu.dimension_semantics<parallel>], iteration_bounds = array<i64: 1>, scalar_prefetch = 0 : i64, scratch_operands = 0 : i64, tpu.core_type = #tpu.core_type<tc>, window_params = [{transform_indices = @transform_0, window_bounds = array<i64: 16, 32>}, {pipeline_mode = #tpu.pipeline_mode<synchronous>, transform_indices = @transform_1, window_bounds = array<i64: 1, 32>}, {pipeline_mode = #tpu.pipeline_mode<synchronous>, transform_indices = @transform_2, window_bounds = array<i64: 1, 32>}, {transform_indices = @transform_3, window_bounds = array<i64: 16, 32>}]} {
    %c0 = arith.constant 0 : index
    %c0_0 = arith.constant 0 : index
    %0 = vector.load %arg1[%c0, %c0_0] : memref<16x32xf32, #tpu.memory_space<vmem>>, vector<16x32xf32>
    %cst = arith.constant dense<0.000000e+00> : vector<16xf32>
    %1 = vector.multi_reduction <add>, %0, %cst [1] : vector<16x32xf32> to vector<16xf32>
    %2 = vector.shape_cast %1 : vector<16xf32> to vector<16x1xf32>
    %cst_1 = arith.constant 3.200000e+01 : f32
    %3 = vector.broadcast %cst_1 : f32 to vector<16x1xf32>
    %4 = arith.divf %2, %3 : vector<16x1xf32>
    %5 = vector.broadcast %4 : vector<16x1xf32> to vector<16x32xf32>
    %6 = arith.subf %0, %5 : vector<16x32xf32>
    %7 = arith.mulf %6, %6 : vector<16x32xf32>
    %cst_2 = arith.constant dense<0.000000e+00> : vector<16xf32>
    %8 = vector.multi_reduction <add>, %7, %cst_2 [1] : vector<16x32xf32> to vector<16xf32>
    %9 = vector.shape_cast %8 : vector<16xf32> to vector<16x1xf32>
    %cst_3 = arith.constant 3.200000e+01 : f32
    %10 = vector.broadcast %cst_3 : f32 to vector<16x1xf32>
    %11 = arith.divf %9, %10 : vector<16x1xf32>
    %cst_4 = arith.constant 9.99999974E-6 : f32
    %12 = vector.broadcast %cst_4 : f32 to vector<16x1xf32>
    %13 = arith.addf %11, %12 : vector<16x1xf32>
    %14 = math.rsqrt %13 : vector<16x1xf32>
    %15 = vector.broadcast %14 : vector<16x1xf32> to vector<16x32xf32>
    %16 = arith.mulf %6, %15 : vector<16x32xf32>
    %c0_5 = arith.constant 0 : index
    %c0_6 = arith.constant 0 : index
    %17 = vector.load %arg2[%c0_5, %c0_6] : memref<1x32xf32, #tpu.memory_space<vmem>>, vector<1x32xf32>
    %18 = vector.broadcast %17 : vector<1x32xf32> to vector<16x32xf32>
    %19 = arith.mulf %16, %18 : vector<16x32xf32>
    %c0_7 = arith.constant 0 : index
    %c0_8 = arith.constant 0 : index
    %20 = vector.load %arg3[%c0_7, %c0_8] : memref<1x32xf32, #tpu.memory_space<vmem>>, vector<1x32xf32>
    %21 = vector.broadcast %20 : vector<1x32xf32> to vector<16x32xf32>
    %22 = arith.addf %19, %21 : vector<16x32xf32>
    %c0_9 = arith.constant 0 : index
    %c0_10 = arith.constant 0 : index
    %23 = vector.load %arg4[%c0_9, %c0_10] : memref<16x32xf32, #tpu.memory_space<vmem>>, vector<16x32xf32>
    tpu.vector_store %arg4[%c0_9, %c0_10], %22 {strides = array<i32>} : memref<16x32xf32, #tpu.memory_space<vmem>>, vector<16x32xf32>,
    return
  }
  func.func @transform_0(%arg0: i32) -> (i32, i32) {
    %c0_i32 = arith.constant 0 : i32
    %c0_i32_0 = arith.constant 0 : i32
    return %arg0, %c0_i32 : i32, i32
  }
  func.func @transform_1(%arg0: i32) -> (i32, i32) {
    %c0_i32 = arith.constant 0 : i32
    %c0_i32_0 = arith.constant 0 : i32
    %c0_i32_1 = arith.constant 0 : i32
    return %c0_i32, %c0_i32_0 : i32, i32
  }
  func.func @transform_2(%arg0: i32) -> (i32, i32) {
    %c0_i32 = arith.constant 0 : i32
    %c0_i32_0 = arith.constant 0 : i32
    %c0_i32_1 = arith.constant 0 : i32
    return %c0_i32, %c0_i32_0 : i32, i32
  }
  func.func @transform_3(%arg0: i32) -> (i32, i32) {
    %c0_i32 = arith.constant 0 : i32
    %c0_i32_0 = arith.constant 0 : i32
    return %arg0, %c0_i32 : i32, i32
  }
}

module attributes {stable_mosaic.version = 11 : i64} {
  func.func @_linear_kernel(%arg0: i32, %arg1: i32, %arg2: i32, %arg3: memref<16x128xbf16, #tpu.memory_space<vmem>>, %arg4: memref<128x128xbf16, #tpu.memory_space<vmem>>, %arg5: memref<1x128xf32, #tpu.memory_space<vmem>>, %arg6: memref<16x128xf32, #tpu.memory_space<vmem>>, %arg7: memref<16x128xf32, #tpu.memory_space<vmem>>) attributes {dimension_semantics = [#tpu.dimension_semantics<parallel>, #tpu.dimension_semantics<parallel>, #tpu.dimension_semantics<arbitrary>], iteration_bounds = array<i64: 1, 1, 1>, scalar_prefetch = 0 : i64, scratch_operands = 1 : i64, tpu.core_type = #tpu.core_type<tc>, window_params = [{transform_indices = @transform_0, window_bounds = array<i64: 16, 128>}, {transform_indices = @transform_1, window_bounds = array<i64: 128, 128>}, {transform_indices = @transform_2, window_bounds = array<i64: 1, 128>}, {transform_indices = @transform_3, window_bounds = array<i64: 16, 128>}]} {
    %c0_i32 = arith.constant 0 : i32
    %0 = arith.cmpi eq, %arg2, %c0_i32 : i32
    %1 = arith.extui %0 : i1 to i32
    %c0_i32_0 = arith.constant 0 : i32
    %2 = arith.cmpi ne, %1, %c0_i32_0 : i32
    scf.if %2 {
      %cst_10 = arith.constant 0.000000e+00 : f32
      %12 = vector.broadcast %cst_10 : f32 to vector<16x128xf32>
      %c0_11 = arith.constant 0 : index
      %c0_12 = arith.constant 0 : index
      %13 = vector.load %arg7[%c0_11, %c0_12] : memref<16x128xf32, #tpu.memory_space<vmem>>, vector<16x128xf32>
      tpu.vector_store %arg7[%c0_11, %c0_12], %12 {strides = array<i32>} : memref<16x128xf32, #tpu.memory_space<vmem>>, vector<16x128xf32>,
    } else {
    }
    %c0 = arith.constant 0 : index
    %c0_1 = arith.constant 0 : index
    %3 = vector.load %arg3[%c0, %c0_1] : memref<16x128xbf16, #tpu.memory_space<vmem>>, vector<16x128xbf16>
    %c0_2 = arith.constant 0 : index
    %c0_3 = arith.constant 0 : index
    %4 = vector.load %arg4[%c0_2, %c0_3] : memref<128x128xbf16, #tpu.memory_space<vmem>>, vector<128x128xbf16>
    %c0_4 = arith.constant 0 : index
    %c0_5 = arith.constant 0 : index
    %5 = vector.load %arg7[%c0_4, %c0_5] : memref<16x128xf32, #tpu.memory_space<vmem>>, vector<16x128xf32>
    %cst = arith.constant dense<0.000000e+00> : vector<16x128xf32>
    %6 = tpu.matmul %3, %4, %cst {dimension_numbers = #tpu.dot_dimension_numbers<[1], [0], [0], [1], [0, 0, 1, 1], [], []>} : vector<16x128xbf16>, vector<128x128xbf16>, vector<16x128xf32> -> vector<16x128xf32>
    %7 = arith.addf %5, %6 : vector<16x128xf32>
    %c0_6 = arith.constant 0 : index
    %c0_7 = arith.constant 0 : index
    %8 = vector.load %arg7[%c0_6, %c0_7] : memref<16x128xf32, #tpu.memory_space<vmem>>, vector<16x128xf32>
    tpu.vector_store %arg7[%c0_6, %c0_7], %7 {strides = array<i32>} : memref<16x128xf32, #tpu.memory_space<vmem>>, vector<16x128xf32>,
    %c0_i32_8 = arith.constant 0 : i32
    %9 = arith.cmpi eq, %arg2, %c0_i32_8 : i32
    %10 = arith.extui %9 : i1 to i32
    %c0_i32_9 = arith.constant 0 : i32
    %11 = arith.cmpi ne, %10, %c0_i32_9 : i32
    scf.if %11 {
      %c0_10 = arith.constant 0 : index
      %c0_11 = arith.constant 0 : index
      %12 = vector.load %arg7[%c0_10, %c0_11] : memref<16x128xf32, #tpu.memory_space<vmem>>, vector<16x128xf32>
      %c0_12 = arith.constant 0 : index
      %c0_13 = arith.constant 0 : index
      %13 = vector.load %arg5[%c0_12, %c0_13] : memref<1x128xf32, #tpu.memory_space<vmem>>, vector<1x128xf32>
      %14 = vector.broadcast %13 : vector<1x128xf32> to vector<16x128xf32>
      %15 = arith.addf %12, %14 : vector<16x128xf32>
      %c0_14 = arith.constant 0 : index
      %c0_15 = arith.constant 0 : index
      %16 = vector.load %arg6[%c0_14, %c0_15] : memref<16x128xf32, #tpu.memory_space<vmem>>, vector<16x128xf32>
      tpu.vector_store %arg6[%c0_14, %c0_15], %15 {strides = array<i32>} : memref<16x128xf32, #tpu.memory_space<vmem>>, vector<16x128xf32>,
    } else {
    }
    return
  }
  func.func @transform_0(%arg0: i32, %arg1: i32, %arg2: i32) -> (i32, i32) {
    %c0_i32 = arith.constant 0 : i32
    return %arg0, %arg2 : i32, i32
  }
  func.func @transform_1(%arg0: i32, %arg1: i32, %arg2: i32) -> (i32, i32) {
    %c0_i32 = arith.constant 0 : i32
    return %arg2, %arg1 : i32, i32
  }
  func.func @transform_2(%arg0: i32, %arg1: i32, %arg2: i32) -> (i32, i32) {
    %c0_i32 = arith.constant 0 : i32
    %c0_i32_0 = arith.constant 0 : i32
    return %c0_i32, %arg1 : i32, i32
  }
  func.func @transform_3(%arg0: i32, %arg1: i32, %arg2: i32) -> (i32, i32) {
    %c0_i32 = arith.constant 0 : i32
    return %arg0, %arg1 : i32, i32
  }
}

module attributes {stable_mosaic.version = 11 : i64} {
  func.func @_attn_kernel(%arg0: i32, %arg1: memref<1x8x32xbf16, #tpu.memory_space<vmem>>, %arg2: memref<1x8x32xbf16, #tpu.memory_space<vmem>>, %arg3: memref<1x8x32xbf16, #tpu.memory_space<vmem>>, %arg4: memref<1x8x8xf32, #tpu.memory_space<vmem>>, %arg5: memref<1x8x32xf32, #tpu.memory_space<vmem>>) attributes {dimension_semantics = [#tpu.dimension_semantics<parallel>], iteration_bounds = array<i64: 2>, scalar_prefetch = 0 : i64, scratch_operands = 0 : i64, tpu.core_type = #tpu.core_type<tc>, window_params = [{transform_indices = @transform_0, window_bounds = array<i64: 1, 8, 32>}, {transform_indices = @transform_1, window_bounds = array<i64: 1, 8, 32>}, {transform_indices = @transform_2, window_bounds = array<i64: 1, 8, 32>}, {transform_indices = @transform_3, window_bounds = array<i64: 1, 8, 8>}, {transform_indices = @transform_4, window_bounds = array<i64: 1, 8, 32>}]} {
    %c0 = arith.constant 0 : index
    %c0_0 = arith.constant 0 : index
    %c0_1 = arith.constant 0 : index
    %0 = vector.load %arg1[%c0, %c0_0, %c0_1] : memref<1x8x32xbf16, #tpu.memory_space<vmem>>, vector<1x8x32xbf16>
    %1 = vector.shape_cast %0 : vector<1x8x32xbf16> to vector<8x32xbf16>
    %c0_2 = arith.constant 0 : index
    %c0_3 = arith.constant 0 : index
    %c0_4 = arith.constant 0 : index
    %2 = vector.load %arg2[%c0_2, %c0_3, %c0_4] : memref<1x8x32xbf16, #tpu.memory_space<vmem>>, vector<1x8x32xbf16>
    %3 = vector.shape_cast %2 : vector<1x8x32xbf16> to vector<8x32xbf16>
    %c0_5 = arith.constant 0 : index
    %c0_6 = arith.constant 0 : index
    %c0_7 = arith.constant 0 : index
    %4 = vector.load %arg3[%c0_5, %c0_6, %c0_7] : memref<1x8x32xbf16, #tpu.memory_space<vmem>>, vector<1x8x32xbf16>
    %5 = vector.shape_cast %4 : vector<1x8x32xbf16> to vector<8x32xbf16>
    %c0_8 = arith.constant 0 : index
    %c0_9 = arith.constant 0 : index
    %c0_10 = arith.constant 0 : index
    %6 = vector.load %arg4[%c0_8, %c0_9, %c0_10] : memref<1x8x8xf32, #tpu.memory_space<vmem>>, vector<1x8x8xf32>
    %7 = vector.shape_cast %6 : vector<1x8x8xf32> to vector<8x8xf32>
    %8 = vector.extract_strided_slice %1 {offsets = [0, 0], sizes = [8, 8], strides = [1, 1]} : vector<8x32xbf16> to vector<8x8xbf16>
    %9 = vector.extract_strided_slice %3 {offsets = [0, 0], sizes = [8, 8], strides = [1, 1]} : vector<8x32xbf16> to vector<8x8xbf16>
    %10 = vector.extract_strided_slice %5 {offsets = [0, 0], sizes = [8, 8], strides = [1, 1]} : vector<8x32xbf16> to vector<8x8xbf16>
    %cst = arith.constant dense<0.000000e+00> : vector<8x8xf32>
    %11 = tpu.matmul %8, %9, %cst {dimension_numbers = #tpu.dot_dimension_numbers<[1], [1], [0], [0], [0, 0, 1, 0], [], []>} : vector<8x8xbf16>, vector<8x8xbf16>, vector<8x8xf32> -> vector<8x8xf32>
    %cst_11 = arith.constant 0.353553385 : f32
    %12 = vector.broadcast %cst_11 : f32 to vector<8x8xf32>
    %13 = arith.mulf %11, %12 : vector<8x8xf32>
    %14 = arith.addf %13, %7 : vector<8x8xf32>
    %cst_12 = arith.constant dense<0xFF800000> : vector<8xf32>
    %15 = vector.multi_reduction <maximumf>, %14, %cst_12 [1] : vector<8x8xf32> to vector<8xf32>
    %16 = vector.shape_cast %15 : vector<8xf32> to vector<8x1xf32>
    %17 = vector.broadcast %16 : vector<8x1xf32> to vector<8x8xf32>
    %18 = arith.subf %14, %17 : vector<8x8xf32>
    %19 = math.exp %18 : vector<8x8xf32>
    %cst_13 = arith.constant dense<0.000000e+00> : vector<8xf32>
    %20 = vector.multi_reduction <add>, %19, %cst_13 [1] : vector<8x8xf32> to vector<8xf32>
    %21 = vector.shape_cast %20 : vector<8xf32> to vector<8x1xf32>
    %22 = arith.truncf %19 : vector<8x8xf32> to vector<8x8xbf16>
    %cst_14 = arith.constant dense<0.000000e+00> : vector<8x8xf32>
    %23 = tpu.matmul %22, %10, %cst_14 {dimension_numbers = #tpu.dot_dimension_numbers<[1], [0], [0], [1], [0, 0, 1, 1], [], []>} : vector<8x8xbf16>, vector<8x8xbf16>, vector<8x8xf32> -> vector<8x8xf32>
    %24 = tpu.reciprocal %21 {approx = true} : vector<8x1xf32> -> vector<8x1xf32>
    %25 = vector.broadcast %24 : vector<8x1xf32> to vector<8x8xf32>
    %26 = arith.mulf %23, %25 : vector<8x8xf32>
    %27 = vector.extract_strided_slice %1 {offsets = [0, 8], sizes = [8, 8], strides = [1, 1]} : vector<8x32xbf16> to vector<8x8xbf16>
    %28 = vector.extract_strided_slice %3 {offsets = [0, 8], sizes = [8, 8], strides = [1, 1]} : vector<8x32xbf16> to vector<8x8xbf16>
    %29 = vector.extract_strided_slice %5 {offsets = [0, 8], sizes = [8, 8], strides = [1, 1]} : vector<8x32xbf16> to vector<8x8xbf16>
    %cst_15 = arith.constant dense<0.000000e+00> : vector<8x8xf32>
    %30 = tpu.matmul %27, %28, %cst_15 {dimension_numbers = #tpu.dot_dimension_numbers<[1], [1], [0], [0], [0, 0, 1, 0], [], []>} : vector<8x8xbf16>, vector<8x8xbf16>, vector<8x8xf32> -> vector<8x8xf32>
    %cst_16 = arith.constant 0.353553385 : f32
    %31 = vector.broadcast %cst_16 : f32 to vector<8x8xf32>
    %32 = arith.mulf %30, %31 : vector<8x8xf32>
    %33 = arith.addf %32, %7 : vector<8x8xf32>
    %cst_17 = arith.constant dense<0xFF800000> : vector<8xf32>
    %34 = vector.multi_reduction <maximumf>, %33, %cst_17 [1] : vector<8x8xf32> to vector<8xf32>
    %35 = vector.shape_cast %34 : vector<8xf32> to vector<8x1xf32>
    %36 = vector.broadcast %35 : vector<8x1xf32> to vector<8x8xf32>
    %37 = arith.subf %33, %36 : vector<8x8xf32>
    %38 = math.exp %37 : vector<8x8xf32>
    %cst_18 = arith.constant dense<0.000000e+00> : vector<8xf32>
    %39 = vector.multi_reduction <add>, %38, %cst_18 [1] : vector<8x8xf32> to vector<8xf32>
    %40 = vector.shape_cast %39 : vector<8xf32> to vector<8x1xf32>
    %41 = arith.truncf %38 : vector<8x8xf32> to vector<8x8xbf16>
    %cst_19 = arith.constant dense<0.000000e+00> : vector<8x8xf32>
    %42 = tpu.matmul %41, %29, %cst_19 {dimension_numbers = #tpu.dot_dimension_numbers<[1], [0], [0], [1], [0, 0, 1, 1], [], []>} : vector<8x8xbf16>, vector<8x8xbf16>, vector<8x8xf32> -> vector<8x8xf32>
    %43 = tpu.reciprocal %40 {approx = true} : vector<8x1xf32> -> vector<8x1xf32>
    %44 = vector.broadcast %43 : vector<8x1xf32> to vector<8x8xf32>
    %45 = arith.mulf %42, %44 : vector<8x8xf32>
    %46 = vector.extract_strided_slice %1 {offsets = [0, 16], sizes = [8, 8], strides = [1, 1]} : vector<8x32xbf16> to vector<8x8xbf16>
    %47 = vector.extract_strided_slice %3 {offsets = [0, 16], sizes = [8, 8], strides = [1, 1]} : vector<8x32xbf16> to vector<8x8xbf16>
    %48 = vector.extract_strided_slice %5 {offsets = [0, 16], sizes = [8, 8], strides = [1, 1]} : vector<8x32xbf16> to vector<8x8xbf16>
    %cst_20 = arith.constant dense<0.000000e+00> : vector<8x8xf32>
    %49 = tpu.matmul %46, %47, %cst_20 {dimension_numbers = #tpu.dot_dimension_numbers<[1], [1], [0], [0], [0, 0, 1, 0], [], []>} : vector<8x8xbf16>, vector<8x8xbf16>, vector<8x8xf32> -> vector<8x8xf32>
    %cst_21 = arith.constant 0.353553385 : f32
    %50 = vector.broadcast %cst_21 : f32 to vector<8x8xf32>
    %51 = arith.mulf %49, %50 : vector<8x8xf32>
    %52 = arith.addf %51, %7 : vector<8x8xf32>
    %cst_22 = arith.constant dense<0xFF800000> : vector<8xf32>
    %53 = vector.multi_reduction <maximumf>, %52, %cst_22 [1] : vector<8x8xf32> to vector<8xf32>
    %54 = vector.shape_cast %53 : vector<8xf32> to vector<8x1xf32>
    %55 = vector.broadcast %54 : vector<8x1xf32> to vector<8x8xf32>
    %56 = arith.subf %52, %55 : vector<8x8xf32>
    %57 = math.exp %56 : vector<8x8xf32>
    %cst_23 = arith.constant dense<0.000000e+00> : vector<8xf32>
    %58 = vector.multi_reduction <add>, %57, %cst_23 [1] : vector<8x8xf32> to vector<8xf32>
    %59 = vector.shape_cast %58 : vector<8xf32> to vector<8x1xf32>
    %60 = arith.truncf %57 : vector<8x8xf32> to vector<8x8xbf16>
    %cst_24 = arith.constant dense<0.000000e+00> : vector<8x8xf32>
    %61 = tpu.matmul %60, %48, %cst_24 {dimension_numbers = #tpu.dot_dimension_numbers<[1], [0], [0], [1], [0, 0, 1, 1], [], []>} : vector<8x8xbf16>, vector<8x8xbf16>, vector<8x8xf32> -> vector<8x8xf32>
    %62 = tpu.reciprocal %59 {approx = true} : vector<8x1xf32> -> vector<8x1xf32>
    %63 = vector.broadcast %62 : vector<8x1xf32> to vector<8x8xf32>
    %64 = arith.mulf %61, %63 : vector<8x8xf32>
    %65 = vector.extract_strided_slice %1 {offsets = [0, 24], sizes = [8, 8], strides = [1, 1]} : vector<8x32xbf16> to vector<8x8xbf16>
    %66 = vector.extract_strided_slice %3 {offsets = [0, 24], sizes = [8, 8], strides = [1, 1]} : vector<8x32xbf16> to vector<8x8xbf16>
    %67 = vector.extract_strided_slice %5 {offsets = [0, 24], sizes = [8, 8], strides = [1, 1]} : vector<8x32xbf16> to vector<8x8xbf16>
    %cst_25 = arith.constant dense<0.000000e+00> : vector<8x8xf32>
    %68 = tpu.matmul %65, %66, %cst_25 {dimension_numbers = #tpu.dot_dimension_numbers<[1], [1], [0], [0], [0, 0, 1, 0], [], []>} : vector<8x8xbf16>, vector<8x8xbf16>, vector<8x8xf32> -> vector<8x8xf32>
    %cst_26 = arith.constant 0.353553385 : f32
    %69 = vector.broadcast %cst_26 : f32 to vector<8x8xf32>
    %70 = arith.mulf %68, %69 : vector<8x8xf32>
    %71 = arith.addf %70, %7 : vector<8x8xf32>
    %cst_27 = arith.constant dense<0xFF800000> : vector<8xf32>
    %72 = vector.multi_reduction <maximumf>, %71, %cst_27 [1] : vector<8x8xf32> to vector<8xf32>
    %73 = vector.shape_cast %72 : vector<8xf32> to vector<8x1xf32>
    %74 = vector.broadcast %73 : vector<8x1xf32> to vector<8x8xf32>
    %75 = arith.subf %71, %74 : vector<8x8xf32>
    %76 = math.exp %75 : vector<8x8xf32>
    %cst_28 = arith.constant dense<0.000000e+00> : vector<8xf32>
    %77 = vector.multi_reduction <add>, %76, %cst_28 [1] : vector<8x8xf32> to vector<8xf32>
    %78 = vector.shape_cast %77 : vector<8xf32> to vector<8x1xf32>
    %79 = arith.truncf %76 : vector<8x8xf32> to vector<8x8xbf16>
    %cst_29 = arith.constant dense<0.000000e+00> : vector<8x8xf32>
    %80 = tpu.matmul %79, %67, %cst_29 {dimension_numbers = #tpu.dot_dimension_numbers<[1], [0], [0], [1], [0, 0, 1, 1], [], []>} : vector<8x8xbf16>, vector<8x8xbf16>, vector<8x8xf32> -> vector<8x8xf32>
    %81 = tpu.reciprocal %78 {approx = true} : vector<8x1xf32> -> vector<8x1xf32>
    %82 = vector.broadcast %81 : vector<8x1xf32> to vector<8x8xf32>
    %83 = arith.mulf %80, %82 : vector<8x8xf32>
    %84 = tpu.concatenate %26, %45, %64, %83 in 1 : vector<8x8xf32>, vector<8x8xf32>, vector<8x8xf32>, vector<8x8xf32> -> vector<8x32xf32>
    %c0_30 = arith.constant 0 : index
    %c0_31 = arith.constant 0 : index
    %c0_32 = arith.constant 0 : index
    %85 = vector.load %arg5[%c0_30, %c0_31, %c0_32] : memref<1x8x32xf32, #tpu.memory_space<vmem>>, vector<1x8x32xf32>
    %86 = vector.shape_cast %85 : vector<1x8x32xf32> to vector<8x32xf32>
    %87 = vector.shape_cast %84 : vector<8x32xf32> to vector<1x8x32xf32>
    tpu.vector_store %arg5[%c0_30, %c0_31, %c0_32], %87 {strides = array<i32>} : memref<1x8x32xf32, #tpu.memory_space<vmem>>, vector<1x8x32xf32>,
    return
  }
  func.func @transform_0(%arg0: i32) -> (i32, i32, i32) {
    %c0_i32 = arith.constant 0 : i32
    %c0_i32_0 = arith.constant 0 : i32
    %c0_i32_1 = arith.constant 0 : i32
    return %arg0, %c0_i32, %c0_i32_0 : i32, i32, i32
  }
  func.func @transform_1(%arg0: i32) -> (i32, i32, i32) {
    %c0_i32 = arith.constant 0 : i32
    %c0_i32_0 = arith.constant 0 : i32
    %c0_i32_1 = arith.constant 0 : i32
    return %arg0, %c0_i32, %c0_i32_0 : i32, i32, i32
  }
  func.func @transform_2(%arg0: i32) -> (i32, i32, i32) {
    %c0_i32 = arith.constant 0 : i32
    %c0_i32_0 = arith.constant 0 : i32
    %c0_i32_1 = arith.constant 0 : i32
    return %arg0, %c0_i32, %c0_i32_0 : i32, i32, i32
  }
  func.func @transform_3(%arg0: i32) -> (i32, i32, i32) {
    %c0_i32 = arith.constant 0 : i32
    %c0_i32_0 = arith.constant 0 : i32
    %c0_i32_1 = arith.constant 0 : i32
    return %arg0, %c0_i32, %c0_i32_0 : i32, i32, i32
  }
  func.func @transform_4(%arg0: i32) -> (i32, i32, i32) {
    %c0_i32 = arith.constant 0 : i32
    %c0_i32_0 = arith.constant 0 : i32
    %c0_i32_1 = arith.constant 0 : i32
    return %arg0, %c0_i32, %c0_i32_0 : i32, i32, i32
  }
}

module attributes {stable_mosaic.version = 11 : i64} {
  func.func @_ln_kernel(%arg0: i32, %arg1: memref<16x32xf32, #tpu.memory_space<vmem>>, %arg2: memref<16x32xf32, #tpu.memory_space<vmem>>, %arg3: memref<1x32xf32, #tpu.memory_space<vmem>>, %arg4: memref<1x32xf32, #tpu.memory_space<vmem>>, %arg5: memref<16x32xf32, #tpu.memory_space<vmem>>) attributes {dimension_semantics = [#tpu.dimension_semantics<parallel>], iteration_bounds = array<i64: 1>, scalar_prefetch = 0 : i64, scratch_operands = 0 : i64, tpu.core_type = #tpu.core_type<tc>, window_params = [{transform_indices = @transform_0, window_bounds = array<i64: 16, 32>}, {transform_indices = @transform_1, window_bounds = array<i64: 16, 32>}, {pipeline_mode = #tpu.pipeline_mode<synchronous>, transform_indices = @transform_2, window_bounds = array<i64: 1, 32>}, {pipeline_mode = #tpu.pipeline_mode<synchronous>, transform_indices = @transform_3, window_bounds = array<i64: 1, 32>}, {transform_indices = @transform_4, window_bounds = array<i64: 16, 32>}]} {
    %c0 = arith.constant 0 : index
    %c0_0 = arith.constant 0 : index
    %0 = vector.load %arg1[%c0, %c0_0] : memref<16x32xf32, #tpu.memory_space<vmem>>, vector<16x32xf32>
    %c0_1 = arith.constant 0 : index
    %c0_2 = arith.constant 0 : index
    %1 = vector.load %arg2[%c0_1, %c0_2] : memref<16x32xf32, #tpu.memory_space<vmem>>, vector<16x32xf32>
    %2 = arith.addf %0, %1 : vector<16x32xf32>
    %cst = arith.constant dense<0.000000e+00> : vector<16xf32>
    %3 = vector.multi_reduction <add>, %2, %cst [1] : vector<16x32xf32> to vector<16xf32>
    %4 = vector.shape_cast %3 : vector<16xf32> to vector<16x1xf32>
    %cst_3 = arith.constant 3.200000e+01 : f32
    %5 = vector.broadcast %cst_3 : f32 to vector<16x1xf32>
    %6 = arith.divf %4, %5 : vector<16x1xf32>
    %7 = vector.broadcast %6 : vector<16x1xf32> to vector<16x32xf32>
    %8 = arith.subf %2, %7 : vector<16x32xf32>
    %9 = arith.mulf %8, %8 : vector<16x32xf32>
    %cst_4 = arith.constant dense<0.000000e+00> : vector<16xf32>
    %10 = vector.multi_reduction <add>, %9, %cst_4 [1] : vector<16x32xf32> to vector<16xf32>
    %11 = vector.shape_cast %10 : vector<16xf32> to vector<16x1xf32>
    %cst_5 = arith.constant 3.200000e+01 : f32
    %12 = vector.broadcast %cst_5 : f32 to vector<16x1xf32>
    %13 = arith.divf %11, %12 : vector<16x1xf32>
    %cst_6 = arith.constant 9.99999974E-6 : f32
    %14 = vector.broadcast %cst_6 : f32 to vector<16x1xf32>
    %15 = arith.addf %13, %14 : vector<16x1xf32>
    %16 = math.rsqrt %15 : vector<16x1xf32>
    %17 = vector.broadcast %16 : vector<16x1xf32> to vector<16x32xf32>
    %18 = arith.mulf %8, %17 : vector<16x32xf32>
    %c0_7 = arith.constant 0 : index
    %c0_8 = arith.constant 0 : index
    %19 = vector.load %arg3[%c0_7, %c0_8] : memref<1x32xf32, #tpu.memory_space<vmem>>, vector<1x32xf32>
    %20 = vector.broadcast %19 : vector<1x32xf32> to vector<16x32xf32>
    %21 = arith.mulf %18, %20 : vector<16x32xf32>
    %c0_9 = arith.constant 0 : index
    %c0_10 = arith.constant 0 : index
    %22 = vector.load %arg4[%c0_9, %c0_10] : memref<1x32xf32, #tpu.memory_space<vmem>>, vector<1x32xf32>
    %23 = vector.broadcast %22 : vector<1x32xf32> to vector<16x32xf32>
    %24 = arith.addf %21, %23 : vector<16x32xf32>
    %c0_11 = arith.constant 0 : index
    %c0_12 = arith.constant 0 : index
    %25 = vector.load %arg5[%c0_11, %c0_12] : memref<16x32xf32, #tpu.memory_space<vmem>>, vector<16x32xf32>
    tpu.vector_store %arg5[%c0_11, %c0_12], %24 {strides = array<i32>} : memref<16x32xf32, #tpu.memory_space<vmem>>, vector<16x32xf32>,
    return
  }
  func.func @transform_0(%arg0: i32) -> (i32, i32) {
    %c0_i32 = arith.constant 0 : i32
    %c0_i32_0 = arith.constant 0 : i32
    return %arg0, %c0_i32 : i32, i32
  }
  func.func @transform_1(%arg0: i32) -> (i32, i32) {
    %c0_i32 = arith.constant 0 : i32
    %c0_i32_0 = arith.constant 0 : i32
    return %arg0, %c0_i32 : i32, i32
  }
  func.func @transform_2(%arg0: i32) -> (i32, i32) {
    %c0_i32 = arith.constant 0 : i32
    %c0_i32_0 = arith.constant 0 : i32
    %c0_i32_1 = arith.constant 0 : i32
    return %c0_i32, %c0_i32_0 : i32, i32
  }
  func.func @transform_3(%arg0: i32) -> (i32, i32) {
    %c0_i32 = arith.constant 0 : i32
    %c0_i32_0 = arith.constant 0 : i32
    %c0_i32_1 = arith.constant 0 : i32
    return %c0_i32, %c0_i32_0 : i32, i32
  }
  func.func @transform_4(%arg0: i32) -> (i32, i32) {
    %c0_i32 = arith.constant 0 : i32
    %c0_i32_0 = arith.constant 0 : i32
    return %arg0, %c0_i32 : i32, i32
  }
}

module attributes {stable_mosaic.version = 11 : i64} {
  func.func @_linear_kernel(%arg0: i32, %arg1: i32, %arg2: i32, %arg3: memref<16x128xbf16, #tpu.memory_space<vmem>>, %arg4: memref<128x128xbf16, #tpu.memory_space<vmem>>, %arg5: memref<1x128xf32, #tpu.memory_space<vmem>>, %arg6: memref<16x128xf32, #tpu.memory_space<vmem>>, %arg7: memref<16x128xf32, #tpu.memory_space<vmem>>) attributes {dimension_semantics = [#tpu.dimension_semantics<parallel>, #tpu.dimension_semantics<parallel>, #tpu.dimension_semantics<arbitrary>], iteration_bounds = array<i64: 1, 1, 1>, scalar_prefetch = 0 : i64, scratch_operands = 1 : i64, tpu.core_type = #tpu.core_type<tc>, window_params = [{transform_indices = @transform_0, window_bounds = array<i64: 16, 128>}, {transform_indices = @transform_1, window_bounds = array<i64: 128, 128>}, {transform_indices = @transform_2, window_bounds = array<i64: 1, 128>}, {transform_indices = @transform_3, window_bounds = array<i64: 16, 128>}]} {
    %c0_i32 = arith.constant 0 : i32
    %0 = arith.cmpi eq, %arg2, %c0_i32 : i32
    %1 = arith.extui %0 : i1 to i32
    %c0_i32_0 = arith.constant 0 : i32
    %2 = arith.cmpi ne, %1, %c0_i32_0 : i32
    scf.if %2 {
      %cst_10 = arith.constant 0.000000e+00 : f32
      %12 = vector.broadcast %cst_10 : f32 to vector<16x128xf32>
      %c0_11 = arith.constant 0 : index
      %c0_12 = arith.constant 0 : index
      %13 = vector.load %arg7[%c0_11, %c0_12] : memref<16x128xf32, #tpu.memory_space<vmem>>, vector<16x128xf32>
      tpu.vector_store %arg7[%c0_11, %c0_12], %12 {strides = array<i32>} : memref<16x128xf32, #tpu.memory_space<vmem>>, vector<16x128xf32>,
    } else {
    }
    %c0 = arith.constant 0 : index
    %c0_1 = arith.constant 0 : index
    %3 = vector.load %arg3[%c0, %c0_1] : memref<16x128xbf16, #tpu.memory_space<vmem>>, vector<16x128xbf16>
    %c0_2 = arith.constant 0 : index
    %c0_3 = arith.constant 0 : index
    %4 = vector.load %arg4[%c0_2, %c0_3] : memref<128x128xbf16, #tpu.memory_space<vmem>>, vector<128x128xbf16>
    %c0_4 = arith.constant 0 : index
    %c0_5 = arith.constant 0 : index
    %5 = vector.load %arg7[%c0_4, %c0_5] : memref<16x128xf32, #tpu.memory_space<vmem>>, vector<16x128xf32>
    %cst = arith.constant dense<0.000000e+00> : vector<16x128xf32>
    %6 = tpu.matmul %3, %4, %cst {dimension_numbers = #tpu.dot_dimension_numbers<[1], [0], [0], [1], [0, 0, 1, 1], [], []>} : vector<16x128xbf16>, vector<128x128xbf16>, vector<16x128xf32> -> vector<16x128xf32>
    %7 = arith.addf %5, %6 : vector<16x128xf32>
    %c0_6 = arith.constant 0 : index
    %c0_7 = arith.constant 0 : index
    %8 = vector.load %arg7[%c0_6, %c0_7] : memref<16x128xf32, #tpu.memory_space<vmem>>, vector<16x128xf32>
    tpu.vector_store %arg7[%c0_6, %c0_7], %7 {strides = array<i32>} : memref<16x128xf32, #tpu.memory_space<vmem>>, vector<16x128xf32>,
    %c0_i32_8 = arith.constant 0 : i32
    %9 = arith.cmpi eq, %arg2, %c0_i32_8 : i32
    %10 = arith.extui %9 : i1 to i32
    %c0_i32_9 = arith.constant 0 : i32
    %11 = arith.cmpi ne, %10, %c0_i32_9 : i32
    scf.if %11 {
      %c0_10 = arith.constant 0 : index
      %c0_11 = arith.constant 0 : index
      %12 = vector.load %arg7[%c0_10, %c0_11] : memref<16x128xf32, #tpu.memory_space<vmem>>, vector<16x128xf32>
      %c0_12 = arith.constant 0 : index
      %c0_13 = arith.constant 0 : index
      %13 = vector.load %arg5[%c0_12, %c0_13] : memref<1x128xf32, #tpu.memory_space<vmem>>, vector<1x128xf32>
      %14 = vector.broadcast %13 : vector<1x128xf32> to vector<16x128xf32>
      %15 = arith.addf %12, %14 : vector<16x128xf32>
      %16 = arith.mulf %15, %15 : vector<16x128xf32>
      %17 = arith.mulf %15, %16 : vector<16x128xf32>
      %cst_14 = arith.constant 4.471500e-02 : f32
      %18 = vector.broadcast %cst_14 : f32 to vector<16x128xf32>
      %19 = arith.mulf %18, %17 : vector<16x128xf32>
      %20 = arith.addf %15, %19 : vector<16x128xf32>
      %cst_15 = arith.constant 0.797884583 : f32
      %21 = vector.broadcast %cst_15 : f32 to vector<16x128xf32>
      %22 = arith.mulf %21, %20 : vector<16x128xf32>
      %23 = math.tanh %22 : vector<16x128xf32>
      %cst_16 = arith.constant 1.000000e+00 : f32
      %24 = vector.broadcast %cst_16 : f32 to vector<16x128xf32>
      %25 = arith.addf %24, %23 : vector<16x128xf32>
      %cst_17 = arith.constant 5.000000e-01 : f32
      %26 = vector.broadcast %cst_17 : f32 to vector<16x128xf32>
      %27 = arith.mulf %26, %25 : vector<16x128xf32>
      %28 = arith.mulf %15, %27 : vector<16x128xf32>
      %c0_18 = arith.constant 0 : index
      %c0_19 = arith.constant 0 : index
      %29 = vector.load %arg6[%c0_18, %c0_19] : memref<16x128xf32, #tpu.memory_space<vmem>>, vector<16x128xf32>
      tpu.vector_store %arg6[%c0_18, %c0_19], %28 {strides = array<i32>} : memref<16x128xf32, #tpu.memory_space<vmem>>, vector<16x128xf32>,
    } else {
    }
    return
  }
  func.func @transform_0(%arg0: i32, %arg1: i32, %arg2: i32) -> (i32, i32) {
    %c0_i32 = arith.constant 0 : i32
    return %arg0, %arg2 : i32, i32
  }
  func.func @transform_1(%arg0: i32, %arg1: i32, %arg2: i32) -> (i32, i32) {
    %c0_i32 = arith.constant 0 : i32
    return %arg2, %arg1 : i32, i32
  }
  func.func @transform_2(%arg0: i32, %arg1: i32, %arg2: i32) -> (i32, i32) {
    %c0_i32 = arith.constant 0 : i32
    %c0_i32_0 = arith.constant 0 : i32
    return %c0_i32, %arg1 : i32, i32
  }
  func.func @transform_3(%arg0: i32, %arg1: i32, %arg2: i32) -> (i32, i32) {
    %c0_i32 = arith.constant 0 : i32
    return %arg0, %arg1 : i32, i32
  }
}

module attributes {stable_mosaic.version = 11 : i64} {
  func.func @_linear_kernel(%arg0: i32, %arg1: i32, %arg2: i32, %arg3: memref<16x128xbf16, #tpu.memory_space<vmem>>, %arg4: memref<128x128xbf16, #tpu.memory_space<vmem>>, %arg5: memref<16x128xf32, #tpu.memory_space<vmem>>, %arg6: memref<16x128xf32, #tpu.memory_space<vmem>>) attributes {dimension_semantics = [#tpu.dimension_semantics<parallel>, #tpu.dimension_semantics<parallel>, #tpu.dimension_semantics<arbitrary>], iteration_bounds = array<i64: 1, 1, 1>, scalar_prefetch = 0 : i64, scratch_operands = 1 : i64, tpu.core_type = #tpu.core_type<tc>, window_params = [{transform_indices = @transform_0, window_bounds = array<i64: 16, 128>}, {transform_indices = @transform_1, window_bounds = array<i64: 128, 128>}, {transform_indices = @transform_2, window_bounds = array<i64: 16, 128>}]} {
    %c0_i32 = arith.constant 0 : i32
    %0 = arith.cmpi eq, %arg2, %c0_i32 : i32
    %1 = arith.extui %0 : i1 to i32
    %c0_i32_0 = arith.constant 0 : i32
    %2 = arith.cmpi ne, %1, %c0_i32_0 : i32
    scf.if %2 {
      %cst_10 = arith.constant 0.000000e+00 : f32
      %12 = vector.broadcast %cst_10 : f32 to vector<16x128xf32>
      %c0_11 = arith.constant 0 : index
      %c0_12 = arith.constant 0 : index
      %13 = vector.load %arg6[%c0_11, %c0_12] : memref<16x128xf32, #tpu.memory_space<vmem>>, vector<16x128xf32>
      tpu.vector_store %arg6[%c0_11, %c0_12], %12 {strides = array<i32>} : memref<16x128xf32, #tpu.memory_space<vmem>>, vector<16x128xf32>,
    } else {
    }
    %c0 = arith.constant 0 : index
    %c0_1 = arith.constant 0 : index
    %3 = vector.load %arg3[%c0, %c0_1] : memref<16x128xbf16, #tpu.memory_space<vmem>>, vector<16x128xbf16>
    %c0_2 = arith.constant 0 : index
    %c0_3 = arith.constant 0 : index
    %4 = vector.load %arg4[%c0_2, %c0_3] : memref<128x128xbf16, #tpu.memory_space<vmem>>, vector<128x128xbf16>
    %c0_4 = arith.constant 0 : index
    %c0_5 = arith.constant 0 : index
    %5 = vector.load %arg6[%c0_4, %c0_5] : memref<16x128xf32, #tpu.memory_space<vmem>>, vector<16x128xf32>
    %cst = arith.constant dense<0.000000e+00> : vector<16x128xf32>
    %6 = tpu.matmul %3, %4, %cst {dimension_numbers = #tpu.dot_dimension_numbers<[1], [1], [0], [0], [0, 0, 1, 0], [], []>} : vector<16x128xbf16>, vector<128x128xbf16>, vector<16x128xf32> -> vector<16x128xf32>
    %7 = arith.addf %5, %6 : vector<16x128xf32>
    %c0_6 = arith.constant 0 : index
    %c0_7 = arith.constant 0 : index
    %8 = vector.load %arg6[%c0_6, %c0_7] : memref<16x128xf32, #tpu.memory_space<vmem>>, vector<16x128xf32>
    tpu.vector_store %arg6[%c0_6, %c0_7], %7 {strides = array<i32>} : memref<16x128xf32, #tpu.memory_space<vmem>>, vector<16x128xf32>,
    %c0_i32_8 = arith.constant 0 : i32
    %9 = arith.cmpi eq, %arg2, %c0_i32_8 : i32
    %10 = arith.extui %9 : i1 to i32
    %c0_i32_9 = arith.constant 0 : i32
    %11 = arith.cmpi ne, %10, %c0_i32_9 : i32
    scf.if %11 {
      %c0_10 = arith.constant 0 : index
      %c0_11 = arith.constant 0 : index
      %12 = vector.load %arg6[%c0_10, %c0_11] : memref<16x128xf32, #tpu.memory_space<vmem>>, vector<16x128xf32>
      %c0_12 = arith.constant 0 : index
      %c0_13 = arith.constant 0 : index
      %13 = vector.load %arg5[%c0_12, %c0_13] : memref<16x128xf32, #tpu.memory_space<vmem>>, vector<16x128xf32>
      tpu.vector_store %arg5[%c0_12, %c0_13], %12 {strides = array<i32>} : memref<16x128xf32, #tpu.memory_space<vmem>>, vector<16x128xf32>,
    } else {
    }
    return
  }
  func.func @transform_0(%arg0: i32, %arg1: i32, %arg2: i32) -> (i32, i32) {
    %c0_i32 = arith.constant 0 : i32
    return %arg0, %arg2 : i32, i32
  }
  func.func @transform_1(%arg0: i32, %arg1: i32, %arg2: i32) -> (i32, i32) {
    %c0_i32 = arith.constant 0 : i32
    return %arg1, %arg2 : i32, i32
  }
  func.func @transform_2(%arg0: i32, %arg1: i32, %arg2: i32) -> (i32, i32) {
    %c0_i32 = arith.constant 0 : i32
    return %arg0, %arg1 : i32, i32
  }
}

module attributes {stable_mosaic.version = 11 : i64} {
  func.func @_ce_kernel(%arg0: i32, %arg1: memref<16x1xi32, #tpu.memory_space<vmem>>, %arg2: memref<16x128xf32, #tpu.memory_space<vmem>>, %arg3: memref<1x1xf32, #tpu.memory_space<vmem>>, %arg4: memref<1x1xf32, #tpu.memory_space<vmem>>, %arg5: memref<16x1xf32, #tpu.memory_space<vmem>>, %arg6: memref<16x1xf32, #tpu.memory_space<vmem>>, %arg7: memref<16x1xf32, #tpu.memory_space<vmem>>, %arg8: memref<16x1xf32, #tpu.memory_space<vmem>>, %arg9: memref<16x1xf32, #tpu.memory_space<vmem>>, %arg10: memref<16x1xf32, #tpu.memory_space<vmem>>) attributes {dimension_semantics = [#tpu.dimension_semantics<arbitrary>], iteration_bounds = array<i64: 1>, scalar_prefetch = 0 : i64, scratch_operands = 6 : i64, tpu.core_type = #tpu.core_type<tc>, window_params = [{pipeline_mode = #tpu.pipeline_mode<synchronous>, transform_indices = @transform_0, window_bounds = array<i64: 16, 1>}, {transform_indices = @transform_1, window_bounds = array<i64: 16, 128>}, {pipeline_mode = #tpu.pipeline_mode<synchronous>, transform_indices = @transform_2, window_bounds = array<i64: 1, 1>}, {pipeline_mode = #tpu.pipeline_mode<synchronous>, transform_indices = @transform_3, window_bounds = array<i64: 1, 1>}]} {
    %c0_i32 = arith.constant 0 : i32
    %0 = arith.cmpi eq, %arg0, %c0_i32 : i32
    %1 = arith.extui %0 : i1 to i32
    %c0_i32_0 = arith.constant 0 : i32
    %2 = arith.cmpi ne, %1, %c0_i32_0 : i32
    scf.if %2 {
      %cst_43 = arith.constant -1.000000e+30 : f32
      %65 = vector.broadcast %cst_43 : f32 to vector<16x1xf32>
      %c0_44 = arith.constant 0 : index
      %c0_45 = arith.constant 0 : index
      %66 = vector.load %arg5[%c0_44, %c0_45] : memref<16x1xf32, #tpu.memory_space<vmem>>, vector<16x1xf32>
      tpu.vector_store %arg5[%c0_44, %c0_45], %65 {strides = array<i32>} : memref<16x1xf32, #tpu.memory_space<vmem>>, vector<16x1xf32>,
      %cst_46 = arith.constant 0.000000e+00 : f32
      %67 = vector.broadcast %cst_46 : f32 to vector<16x1xf32>
      %c0_47 = arith.constant 0 : index
      %c0_48 = arith.constant 0 : index
      %68 = vector.load %arg6[%c0_47, %c0_48] : memref<16x1xf32, #tpu.memory_space<vmem>>, vector<16x1xf32>
      tpu.vector_store %arg6[%c0_47, %c0_48], %67 {strides = array<i32>} : memref<16x1xf32, #tpu.memory_space<vmem>>, vector<16x1xf32>,
      %cst_49 = arith.constant 0.000000e+00 : f32
      %69 = vector.broadcast %cst_49 : f32 to vector<16x1xf32>
      %c0_50 = arith.constant 0 : index
      %c0_51 = arith.constant 0 : index
      %70 = vector.load %arg7[%c0_50, %c0_51] : memref<16x1xf32, #tpu.memory_space<vmem>>, vector<16x1xf32>
      tpu.vector_store %arg7[%c0_50, %c0_51], %69 {strides = array<i32>} : memref<16x1xf32, #tpu.memory_space<vmem>>, vector<16x1xf32>,
      %cst_52 = arith.constant 0.000000e+00 : f32
      %71 = vector.broadcast %cst_52 : f32 to vector<16x1xf32>
      %c0_53 = arith.constant 0 : index
      %c0_54 = arith.constant 0 : index
      %72 = vector.load %arg8[%c0_53, %c0_54] : memref<16x1xf32, #tpu.memory_space<vmem>>, vector<16x1xf32>
      tpu.vector_store %arg8[%c0_53, %c0_54], %71 {strides = array<i32>} : memref<16x1xf32, #tpu.memory_space<vmem>>, vector<16x1xf32>,
      %cst_55 = arith.constant -1.000000e+30 : f32
      %73 = vector.broadcast %cst_55 : f32 to vector<16x1xf32>
      %c0_56 = arith.constant 0 : index
      %c0_57 = arith.constant 0 : index
      %74 = vector.load %arg9[%c0_56, %c0_57] : memref<16x1xf32, #tpu.memory_space<vmem>>, vector<16x1xf32>
      tpu.vector_store %arg9[%c0_56, %c0_57], %73 {strides = array<i32>} : memref<16x1xf32, #tpu.memory_space<vmem>>, vector<16x1xf32>,
      %cst_58 = arith.constant -1.000000e+00 : f32
      %75 = vector.broadcast %cst_58 : f32 to vector<16x1xf32>
      %c0_59 = arith.constant 0 : index
      %c0_60 = arith.constant 0 : index
      %76 = vector.load %arg10[%c0_59, %c0_60] : memref<16x1xf32, #tpu.memory_space<vmem>>, vector<16x1xf32>
      tpu.vector_store %arg10[%c0_59, %c0_60], %75 {strides = array<i32>} : memref<16x1xf32, #tpu.memory_space<vmem>>, vector<16x1xf32>,
    } else {
    }
    %c0 = arith.constant 0 : index
    %c0_1 = arith.constant 0 : index
    %3 = vector.load %arg2[%c0, %c0_1] : memref<16x128xf32, #tpu.memory_space<vmem>>, vector<16x128xf32>
    %c0_2 = arith.constant 0 : index
    %c0_3 = arith.constant 0 : index
    %4 = vector.load %arg1[%c0_2, %c0_3] : memref<16x1xi32, #tpu.memory_space<vmem>>, vector<16x1xi32>
    %5 = tpu.iota {dimensions = array<i32: 1>} : vector<16x128xi32>
    %c128_i32 = arith.constant 128 : i32
    %6 = arith.muli %arg0, %c128_i32 : i32
    %7 = vector.broadcast %6 : i32 to vector<16x128xi32>
    %8 = arith.addi %5, %7 : vector<16x128xi32>
    %c128_i32_4 = arith.constant 128 : i32
    %9 = vector.broadcast %c128_i32_4 : i32 to vector<16x128xi32>
    %10 = arith.cmpi slt, %8, %9 : vector<16x128xi32>
    %cst = arith.constant -1.000000e+30 : f32
    %11 = vector.broadcast %cst : f32 to vector<16x128xf32>
    %12 = arith.select %10, %3, %11 : vector<16x128xi1>, vector<16x128xf32>
    %cst_5 = arith.constant dense<0xFF800000> : vector<16xf32>
    %13 = vector.multi_reduction <maximumf>, %12, %cst_5 [1] : vector<16x128xf32> to vector<16xf32>
    %14 = vector.shape_cast %13 : vector<16xf32> to vector<16x1xf32>
    %c0_6 = arith.constant 0 : index
    %c0_7 = arith.constant 0 : index
    %15 = vector.load %arg5[%c0_6, %c0_7] : memref<16x1xf32, #tpu.memory_space<vmem>>, vector<16x1xf32>
    %16 = arith.maximumf %15, %14 : vector<16x1xf32>
    %c0_8 = arith.constant 0 : index
    %c0_9 = arith.constant 0 : index
    %17 = vector.load %arg6[%c0_8, %c0_9] : memref<16x1xf32, #tpu.memory_space<vmem>>, vector<16x1xf32>
    %c0_10 = arith.constant 0 : index
    %c0_11 = arith.constant 0 : index
    %18 = vector.load %arg5[%c0_10, %c0_11] : memref<16x1xf32, #tpu.memory_space<vmem>>, vector<16x1xf32>
    %19 = arith.subf %18, %16 : vector<16x1xf32>
    %20 = math.exp %19 : vector<16x1xf32>
    %21 = arith.mulf %17, %20 : vector<16x1xf32>
    %22 = vector.broadcast %16 : vector<16x1xf32> to vector<16x128xf32>
    %23 = arith.subf %12, %22 : vector<16x128xf32>
    %24 = math.exp %23 : vector<16x128xf32>
    %cst_12 = arith.constant dense<0.000000e+00> : vector<16xf32>
    %25 = vector.multi_reduction <add>, %24, %cst_12 [1] : vector<16x128xf32> to vector<16xf32>
    %26 = vector.shape_cast %25 : vector<16xf32> to vector<16x1xf32>
    %27 = arith.addf %21, %26 : vector<16x1xf32>
    %c0_13 = arith.constant 0 : index
    %c0_14 = arith.constant 0 : index
    %28 = vector.load %arg6[%c0_13, %c0_14] : memref<16x1xf32, #tpu.memory_space<vmem>>, vector<16x1xf32>
    tpu.vector_store %arg6[%c0_13, %c0_14], %27 {strides = array<i32>} : memref<16x1xf32, #tpu.memory_space<vmem>>, vector<16x1xf32>,
    %c0_15 = arith.constant 0 : index
    %c0_16 = arith.constant 0 : index
    %29 = vector.load %arg5[%c0_15, %c0_16] : memref<16x1xf32, #tpu.memory_space<vmem>>, vector<16x1xf32>
    tpu.vector_store %arg5[%c0_15, %c0_16], %16 {strides = array<i32>} : memref<16x1xf32, #tpu.memory_space<vmem>>, vector<16x1xf32>,
    %c0_17 = arith.constant 0 : index
    %c0_18 = arith.constant 0 : index
    %30 = vector.load %arg7[%c0_17, %c0_18] : memref<16x1xf32, #tpu.memory_space<vmem>>, vector<16x1xf32>
    %cst_19 = arith.constant 0.000000e+00 : f32
    %31 = vector.broadcast %cst_19 : f32 to vector<16x128xf32>
    %32 = arith.select %10, %3, %31 : vector<16x128xi1>, vector<16x128xf32>
    %cst_20 = arith.constant dense<0.000000e+00> : vector<16xf32>
    %33 = vector.multi_reduction <add>, %32, %cst_20 [1] : vector<16x128xf32> to vector<16xf32>
    %34 = vector.shape_cast %33 : vector<16xf32> to vector<16x1xf32>
    %35 = arith.addf %30, %34 : vector<16x1xf32>
    %c0_21 = arith.constant 0 : index
    %c0_22 = arith.constant 0 : index
    %36 = vector.load %arg7[%c0_21, %c0_22] : memref<16x1xf32, #tpu.memory_space<vmem>>, vector<16x1xf32>
    tpu.vector_store %arg7[%c0_21, %c0_22], %35 {strides = array<i32>} : memref<16x1xf32, #tpu.memory_space<vmem>>, vector<16x1xf32>,
    %37 = vector.broadcast %4 : vector<16x1xi32> to vector<16x128xi32>
    %38 = arith.cmpi eq, %8, %37 : vector<16x128xi32>
    %39 = arith.andi %38, %10 : vector<16x128xi1>
    %c0_23 = arith.constant 0 : index
    %c0_24 = arith.constant 0 : index
    %40 = vector.load %arg8[%c0_23, %c0_24] : memref<16x1xf32, #tpu.memory_space<vmem>>, vector<16x1xf32>
    %cst_25 = arith.constant 0.000000e+00 : f32
    %41 = vector.broadcast %cst_25 : f32 to vector<16x128xf32>
    %42 = arith.select %39, %3, %41 : vector<16x128xi1>, vector<16x128xf32>
    %cst_26 = arith.constant dense<0.000000e+00> : vector<16xf32>
    %43 = vector.multi_reduction <add>, %42, %cst_26 [1] : vector<16x128xf32> to vector<16xf32>
    %44 = vector.shape_cast %43 : vector<16xf32> to vector<16x1xf32>
    %45 = arith.addf %40, %44 : vector<16x1xf32>
    %c0_27 = arith.constant 0 : index
    %c0_28 = arith.constant 0 : index
    %46 = vector.load %arg8[%c0_27, %c0_28] : memref<16x1xf32, #tpu.memory_space<vmem>>, vector<16x1xf32>
    tpu.vector_store %arg8[%c0_27, %c0_28], %45 {strides = array<i32>} : memref<16x1xf32, #tpu.memory_space<vmem>>, vector<16x1xf32>,
    %47 = arith.sitofp %8 : vector<16x128xi32> to vector<16x128xf32>
    %48 = vector.broadcast %14 : vector<16x1xf32> to vector<16x128xf32>
    %49 = arith.cmpf oeq, %12, %48 : vector<16x128xf32>
    %cst_29 = arith.constant 1.000000e+30 : f32
    %50 = vector.broadcast %cst_29 : f32 to vector<16x128xf32>
    %51 = arith.select %49, %47, %50 : vector<16x128xi1>, vector<16x128xf32>
    %cst_30 = arith.constant dense<0x7F800000> : vector<16xf32>
    %52 = vector.multi_reduction <minimumf>, %51, %cst_30 [1] : vector<16x128xf32> to vector<16xf32>
    %53 = vector.shape_cast %52 : vector<16xf32> to vector<16x1xf32>
    %c0_31 = arith.constant 0 : index
    %c0_32 = arith.constant 0 : index
    %54 = vector.load %arg9[%c0_31, %c0_32] : memref<16x1xf32, #tpu.memory_space<vmem>>, vector<16x1xf32>
    %55 = arith.cmpf ogt, %14, %54 : vector<16x1xf32>
    %c0_33 = arith.constant 0 : index
    %c0_34 = arith.constant 0 : index
    %56 = vector.load %arg10[%c0_33, %c0_34] : memref<16x1xf32, #tpu.memory_space<vmem>>, vector<16x1xf32>
    %57 = arith.select %55, %53, %56 : vector<16x1xi1>, vector<16x1xf32>
    %c0_35 = arith.constant 0 : index
    %c0_36 = arith.constant 0 : index
    %58 = vector.load %arg10[%c0_35, %c0_36] : memref<16x1xf32, #tpu.memory_space<vmem>>, vector<16x1xf32>
    tpu.vector_store %arg10[%c0_35, %c0_36], %57 {strides = array<i32>} : memref<16x1xf32, #tpu.memory_space<vmem>>, vector<16x1xf32>,
    %c0_37 = arith.constant 0 : index
    %c0_38 = arith.constant 0 : index
    %59 = vector.load %arg9[%c0_37, %c0_38] : memref<16x1xf32, #tpu.memory_space<vmem>>, vector<16x1xf32>
    %60 = arith.select %55, %14, %59 : vector<16x1xi1>, vector<16x1xf32>
    %c0_39 = arith.constant 0 : index
    %c0_40 = arith.constant 0 : index
    %61 = vector.load %arg9[%c0_39, %c0_40] : memref<16x1xf32, #tpu.memory_space<vmem>>, vector<16x1xf32>
    tpu.vector_store %arg9[%c0_39, %c0_40], %60 {strides = array<i32>} : memref<16x1xf32, #tpu.memory_space<vmem>>, vector<16x1xf32>,
    %c0_i32_41 = arith.constant 0 : i32
    %62 = arith.cmpi eq, %arg0, %c0_i32_41 : i32
    %63 = arith.extui %62 : i1 to i32
    %c0_i32_42 = arith.constant 0 : i32
    %64 = arith.cmpi ne, %63, %c0_i32_42 : i32
    scf.if %64 {
      %c0_43 = arith.constant 0 : index
      %c0_44 = arith.constant 0 : index
      %65 = vector.load %arg5[%c0_43, %c0_44] : memref<16x1xf32, #tpu.memory_space<vmem>>, vector<16x1xf32>
      %c0_45 = arith.constant 0 : index
      %c0_46 = arith.constant 0 : index
      %66 = vector.load %arg6[%c0_45, %c0_46] : memref<16x1xf32, #tpu.memory_space<vmem>>, vector<16x1xf32>
      %67 = math.log %66 : vector<16x1xf32>
      %68 = arith.addf %65, %67 : vector<16x1xf32>
      %c0_47 = arith.constant 0 : index
      %c0_48 = arith.constant 0 : index
      %69 = vector.load %arg8[%c0_47, %c0_48] : memref<16x1xf32, #tpu.memory_space<vmem>>, vector<16x1xf32>
      %70 = arith.subf %68, %69 : vector<16x1xf32>
      %c0_49 = arith.constant 0 : index
      %c0_50 = arith.constant 0 : index
      %71 = vector.load %arg7[%c0_49, %c0_50] : memref<16x1xf32, #tpu.memory_space<vmem>>, vector<16x1xf32>
      %cst_51 = arith.constant 1.280000e+02 : f32
      %72 = vector.broadcast %cst_51 : f32 to vector<16x1xf32>
      %73 = arith.divf %71, %72 : vector<16x1xf32>
      %74 = arith.subf %68, %73 : vector<16x1xf32>
      %cst_52 = arith.constant 0.899999976 : f32
      %75 = vector.broadcast %cst_52 : f32 to vector<16x1xf32>
      %76 = arith.mulf %75, %70 : vector<16x1xf32>
      %cst_53 = arith.constant 1.000000e-01 : f32
      %77 = vector.broadcast %cst_53 : f32 to vector<16x1xf32>
      %78 = arith.mulf %77, %74 : vector<16x1xf32>
      %79 = arith.addf %76, %78 : vector<16x1xf32>
      %80 = tpu.iota {dimensions = array<i32: 0>} : vector<16x1xi32>
      %c16_i32 = arith.constant 16 : i32
      %81 = vector.broadcast %c16_i32 : i32 to vector<16x1xi32>
      %82 = arith.cmpi slt, %80, %81 : vector<16x1xi32>
      %83 = arith.extui %82 : vector<16x1xi1> to vector<16x1xi32>
      %84 = arith.sitofp %83 : vector<16x1xi32> to vector<16x1xf32>
      %cst_54 = arith.constant 1.000000e+00 : f32
      %cst_55 = arith.constant 1.600000e+01 : f32
      %85 = arith.divf %cst_54, %cst_55 : f32
      %86 = arith.mulf %79, %84 : vector<16x1xf32>
      %cst_56 = arith.constant dense<0.000000e+00> : vector<1xf32>
      %87 = vector.multi_reduction <add>, %86, %cst_56 [0] : vector<16x1xf32> to vector<1xf32>
      %88 = vector.shape_cast %87 : vector<1xf32> to vector<1x1xf32>
      %89 = vector.broadcast %85 : f32 to vector<1x1xf32>
      %90 = arith.mulf %88, %89 : vector<1x1xf32>
      %c0_57 = arith.constant 0 : index
      %c0_58 = arith.constant 0 : index
      %91 = vector.load %arg3[%c0_57, %c0_58] : memref<1x1xf32, #tpu.memory_space<vmem>>, vector<1x1xf32>
      tpu.vector_store %arg3[%c0_57, %c0_58], %90 {strides = array<i32>} : memref<1x1xf32, #tpu.memory_space<vmem>>, vector<1x1xf32>,
      %c0_59 = arith.constant 0 : index
      %c0_60 = arith.constant 0 : index
      %92 = vector.load %arg10[%c0_59, %c0_60] : memref<16x1xf32, #tpu.memory_space<vmem>>, vector<16x1xf32>
      %93 = arith.sitofp %4 : vector<16x1xi32> to vector<16x1xf32>
      %94 = arith.cmpf oeq, %92, %93 : vector<16x1xf32>
      %95 = arith.extui %94 : vector<16x1xi1> to vector<16x1xi32>
      %96 = arith.sitofp %95 : vector<16x1xi32> to vector<16x1xf32>
      %97 = arith.mulf %96, %84 : vector<16x1xf32>
      %cst_61 = arith.constant dense<0.000000e+00> : vector<1xf32>
      %98 = vector.multi_reduction <add>, %97, %cst_61 [0] : vector<16x1xf32> to vector<1xf32>
      %99 = vector.shape_cast %98 : vector<1xf32> to vector<1x1xf32>
      %100 = vector.broadcast %85 : f32 to vector<1x1xf32>
      %101 = arith.mulf %99, %100 : vector<1x1xf32>
      %c0_62 = arith.constant 0 : index
      %c0_63 = arith.constant 0 : index
      %102 = vector.load %arg4[%c0_62, %c0_63] : memref<1x1xf32, #tpu.memory_space<vmem>>, vector<1x1xf32>
      tpu.vector_store %arg4[%c0_62, %c0_63], %101 {strides = array<i32>} : memref<1x1xf32, #tpu.memory_space<vmem>>, vector<1x1xf32>,
    } else {
    }
    return
  }
  func.func @transform_0(%arg0: i32) -> (i32, i32) {
    %c0_i32 = arith.constant 0 : i32
    %c0_i32_0 = arith.constant 0 : i32
    %c0_i32_1 = arith.constant 0 : i32
    return %c0_i32, %c0_i32_0 : i32, i32
  }
  func.func @transform_1(%arg0: i32) -> (i32, i32) {
    %c0_i32 = arith.constant 0 : i32
    %c0_i32_0 = arith.constant 0 : i32
    return %c0_i32, %arg0 : i32, i32
  }
  func.func @transform_2(%arg0: i32) -> (i32, i32) {
    %c0_i32 = arith.constant 0 : i32
    %c0_i32_0 = arith.constant 0 : i32
    %c0_i32_1 = arith.constant 0 : i32
    return %c0_i32, %c0_i32_0 : i32, i32
  }
  func.func @transform_3(%arg0: i32) -> (i32, i32) {
    %c0_i32 = arith.constant 0 : i32
    %c0_i32_0 = arith.constant 0 : i32
    %c0_i32_1 = arith.constant 0 : i32
    return %c0_i32, %c0_i32_0 : i32, i32
  }
}

</mosaic_0001>

<llo_original>
// kernel: dbart_forward.58
$region0: #{dbart_forward.58}
  #allocation0 [shape = 'u32[]', space=smem, size = 0x4, offset = 0x4, fixed_abs, tag = 'smem constant byte address 0x4 - core index']
  #allocation1 [shape = 'u32[144,128]{1,0:T(1,128)}', space=vmem, size = 0x12000, scoped, tag = 'internal scratch']
  #allocation2 [shape = 'f32[16,128]{1,0:T(8,128)}', space=vmem, size = 0x2000, scoped, tag = 'scratch operand']
  %s0 = inlined_call_operand.vmem [shape: bf16[16,128], index: 0, kind: input, shape index: {}]
  %s1 = inlined_call_operand.vmem [shape: bf16[128,128], index: 1, kind: input, shape index: {}]
  %s2 = inlined_call_operand.vmem [shape: f32[1,128], index: 2, kind: input, shape index: {}]
  %s3 = inlined_call_operand.vmem [shape: f32[16,128], index: 3, kind: output, shape index: {}]
  %s4 = sld [smem:[#allocation0]]
  $region30: #{dbart_forward.58} parent=0
    _
  %s6 = ssub.s32 1, %s4
  %s7 = scalar_select 0, %s6, %s4
  // Predicated region
  $region2: #{dbart_forward.58} parent=0 // pred_check
    _
  $region3: #{dbart_forward.58} parent=0 // pred_check_branch
    %9 = sbr.rel (0) target = $region5
  $region4: #{dbart_forward.58} parent=0 // pred_region
    _
  $region5: #{dbart_forward.58} parent=0 // pred_fallthru
    _
  // Predicated region
  $region6: #{dbart_forward.58} parent=0 // pred_check
    _
  $region7: #{dbart_forward.58} parent=0 // pred_check_branch
    %11 = sbr.rel (0) target = $region9
  $region8: #{dbart_forward.58} parent=0 // pred_region
    _
  $region9: #{dbart_forward.58} parent=0 // pred_fallthru
    _
  // Predicated region
  $region10: #{dbart_forward.58} parent=0 // pred_check
    _
  $region11: #{dbart_forward.58} parent=0 // pred_check_branch
    %13 = sbr.rel (0) target = $region13
  $region12: #{dbart_forward.58} parent=0 // pred_region
    _
  $region13: #{dbart_forward.58} parent=0 // pred_fallthru
    _
  %p15 = scmp.eq.s32.totalorder 0, 0
  // Predicated region
  $region14: #{dbart_forward.58} parent=0 // pred_check
    %p16 = pneg %p15
  $region15: #{dbart_forward.58} parent=0 // pred_check_branch
    %18 = sbr.rel (%p16) target = $region17
  $region16: #{dbart_forward.58} parent=0 // pred_region
    %19 = vst [vmem:[#allocation2] sm:$0xff] 0.0
    %20 = vst [vmem:[#allocation2 + $0x8] sm:$0xff] 0.0
  $region17: #{dbart_forward.58} parent=0 // pred_fallthru
    _
  %v21 = vld [vmem:[%s0] sm:$0xf]
  %v22 = vld [vmem:[%s0 + $0x4] sm:$0xf]
  %v23 = vld [vmem:[%s1] sm:$0xf]
  %v24 = vld [vmem:[%s1 + $0x4] sm:$0xf]
  %v25 = vld [vmem:[%s1 + $0x8] sm:$0xf]
  %v26 = vld [vmem:[%s1 + $0xc] sm:$0xf]
  %v27 = vld [vmem:[%s1 + $0x10] sm:$0xf]
  %v28 = vld [vmem:[%s1 + $0x14] sm:$0xf]
  %v29 = vld [vmem:[%s1 + $0x18] sm:$0xf]
  %v30 = vld [vmem:[%s1 + $0x1c] sm:$0xf]
  %v31 = vld [vmem:[%s1 + $0x20] sm:$0xf]
  %v32 = vld [vmem:[%s1 + $0x24] sm:$0xf]
  %v33 = vld [vmem:[%s1 + $0x28] sm:$0xf]
  %v34 = vld [vmem:[%s1 + $0x2c] sm:$0xf]
  %v35 = vld [vmem:[%s1 + $0x30] sm:$0xf]
  %v36 = vld [vmem:[%s1 + $0x34] sm:$0xf]
  %v37 = vld [vmem:[%s1 + $0x38] sm:$0xf]
  %v38 = vld [vmem:[%s1 + $0x3c] sm:$0xf]
  %v39 = vld [vmem:[#allocation2] sm:$0xff]
  %v40 = vld [vmem:[#allocation2 + $0x8] sm:$0xff]
  %v43 = vunpack.c.l.b16 %v21
  %v44 = vunpack.c.l.b16 %v22
  %v45 = vpack.c.b16 %v44, %v43
  %v63 = vunpack.c.l.b16 %v23
  %v64 = vunpack.c.l.b16 %v24
  %v65 = vunpack.c.l.b16 %v25
  %v66 = vunpack.c.l.b16 %v26
  %v67 = vunpack.c.l.b16 %v27
  %v68 = vunpack.c.l.b16 %v28
  %v69 = vunpack.c.l.b16 %v29
  %v70 = vunpack.c.l.b16 %v30
  %v71 = vunpack.c.l.b16 %v31
  %v72 = vunpack.c.l.b16 %v32
  %v73 = vunpack.c.l.b16 %v33
  %v74 = vunpack.c.l.b16 %v34
  %v75 = vunpack.c.l.b16 %v35
  %v76 = vunpack.c.l.b16 %v36
  %v77 = vunpack.c.l.b16 %v37
  %v78 = vunpack.c.l.b16 %v38
  %v79 = vpack.c.b16 %v64, %v63
  %v80 = vpack.c.b16 %v66, %v65
  %v81 = vpack.c.b16 %v68, %v67
  %v82 = vpack.c.b16 %v70, %v69
  %v83 = vpack.c.b16 %v72, %v71
  %v84 = vpack.c.b16 %v74, %v73
  %v85 = vpack.c.b16 %v76, %v75
  %v86 = vpack.c.b16 %v78, %v77
  %95 = vmatprep.subr.bf16.mxu0 0
  %96 = vmatpush1.bf16.msra.mxu0 %v79
  %97 = vmatprep.subr.bf16.mxu0 0
  %98 = vmatpush1.bf16.msra.mxu0 %v80
  %99 = vmatprep.subr.bf16.mxu0 0
  %100 = vmatpush1.bf16.msra.mxu0 %v81
  %101 = vmatprep.subr.bf16.mxu0 0
  %102 = vmatpush1.bf16.msra.mxu0 %v82
  %103 = vmatprep.subr.bf16.mxu0 0
  %104 = vmatpush1.bf16.msra.mxu0 %v83
  %105 = vmatprep.subr.bf16.mxu0 0
  %106 = vmatpush1.bf16.msra.mxu0 %v84
  %107 = vmatprep.subr.bf16.mxu0 0
  %108 = vmatpush1.bf16.msra.mxu0 %v85
  %109 = vmatprep.subr.bf16.mxu0 0
  %110 = vmatpush1.bf16.msra.mxu0 %v86
  %111 = vmatprep.subr.bf16.mxu0 0
  %112 = vmatpush1.bf16.msra.mxu0 0
  %113 = vmatprep.subr.bf16.mxu0 0
  %114 = vmatpush1.bf16.msra.mxu0 0
  %115 = vmatprep.subr.bf16.mxu0 0
  %116 = vmatpush1.bf16.msra.mxu0 0
  %117 = vmatprep.subr.bf16.mxu0 0
  %118 = vmatpush1.bf16.msra.mxu0 0
  %119 = vmatprep.subr.bf16.mxu0 0
  %120 = vmatpush1.bf16.msra.mxu0 0
  %121 = vmatprep.subr.bf16.mxu0 0
  %122 = vmatpush1.bf16.msra.mxu0 0
  %123 = vmatprep.subr.bf16.mxu0 0
  %124 = vmatpush1.bf16.msra.mxu0 0
  %125 = vmatprep.subr.bf16.mxu0 0
  %126 = vmatpush1.bf16.msra.mxu0 0
  %127 = vmatprep.mubr.bf16.mxu0 0
  %128 = vmatmul.mubr.bf16.gmra.mrb[0].mxu0 %v45
  %v129 = vpop.f32.mrb[0].mxu0
  %v130 = vadd.f32 0.0, %v129
  %v131 = vpop.f32.mrb[0].mxu0
  %v132 = vpop.f32.mrb[0].mxu0
  %v133 = vadd.f32 0.0, %v132
  %v134 = vpop.f32.mrb[0].mxu0
  %135 = vdwg.mxu0
  %v136 = vadd.f32 %v39, %v130
  %v137 = vadd.f32 %v40, %v133
  %138 = vst [vmem:[#allocation2] sm:$0xff] %v136
  %139 = vst [vmem:[#allocation2 + $0x8] sm:$0xff] %v137
  // Predicated region
  $region18: #{dbart_forward.58} parent=0 // pred_check
    %p140 = pneg %p15
  $region19: #{dbart_forward.58} parent=0 // pred_check_branch
    %142 = sbr.rel (%p140) target = $region21
  $region20: #{dbart_forward.58} parent=0 // pred_region
    %v143 = vld [vmem:[#allocation2] sm:$0xff]
    %v144 = vld [vmem:[#allocation2 + $0x8] sm:$0xff]
    %v145 = vld [vmem:[%s2] sm:$0x1]
    %v147 = vlaneseq
    %v148 = vshrl.u32 %v147, 7
    %v149 = vsub.s32 0, %v148
    %v150 = vrot.slane %v145, %v149
    %v152 = vadd.f32 %v143, %v150
    %v153 = vadd.f32 %v144, %v150
    %154 = vst [vmem:[%s3] sm:$0xff] %v152
    %155 = vst [vmem:[%s3 + $0x8] sm:$0xff] %v153
  $region21: #{dbart_forward.58} parent=0 // pred_fallthru
    _
  // Predicated region
  $region22: #{dbart_forward.58} parent=0 // pred_check
    _
  $region23: #{dbart_forward.58} parent=0 // pred_check_branch
    %157 = sbr.rel (0) target = $region25
  $region24: #{dbart_forward.58} parent=0 // pred_region
    _
  $region25: #{dbart_forward.58} parent=0 // pred_fallthru
    _
  // Predicated region
  $region26: #{dbart_forward.58} parent=0 // pred_check
    _
  $region27: #{dbart_forward.58} parent=0 // pred_check_branch
    %159 = sbr.rel (0) target = $region29
  $region28: #{dbart_forward.58} parent=0 // pred_region
    _
  $region29: #{dbart_forward.58} parent=0 // pred_fallthru
    _

// kernel: dbart_forward.57
$region0: #{dbart_forward.57}
  #allocation0 [shape = 'u32[]', space=smem, size = 0x4, offset = 0x4, fixed_abs, tag = 'smem constant byte address 0x4 - core index']
  #allocation1 [shape = 'u32[144,128]{1,0:T(1,128)}', space=vmem, size = 0x12000, scoped, tag = 'internal scratch']
  %s0 = inlined_call_operand.vmem [shape: f32[16,32], index: 0, kind: input, shape index: {}]
  %s1 = inlined_call_operand.vmem [shape: f32[1,32], index: 1, kind: input, shape index: {}]
  %s2 = inlined_call_operand.vmem [shape: f32[1,32], index: 2, kind: input, shape index: {}]
  %s3 = inlined_call_operand.vmem [shape: f32[16,32], index: 3, kind: output, shape index: {}]
  %s4 = sld [smem:[#allocation0]]
  $region22: #{dbart_forward.57} parent=0
    _
  %s6 = ssub.s32 1, %s4
  %s7 = scalar_select 0, %s6, %s4
  // Predicated region
  $region2: #{dbart_forward.57} parent=0 // pred_check
    _
  $region3: #{dbart_forward.57} parent=0 // pred_check_branch
    %9 = sbr.rel (0) target = $region5
  $region4: #{dbart_forward.57} parent=0 // pred_region
    _
  $region5: #{dbart_forward.57} parent=0 // pred_fallthru
    _
  // Predicated region
  $region6: #{dbart_forward.57} parent=0 // pred_check
    _
  $region7: #{dbart_forward.57} parent=0 // pred_check_branch
    %11 = sbr.rel (0) target = $region9
  $region8: #{dbart_forward.57} parent=0 // pred_region
    _
  $region9: #{dbart_forward.57} parent=0 // pred_fallthru
    _
  // Predicated region
  $region10: #{dbart_forward.57} parent=0 // pred_check
    _
  $region11: #{dbart_forward.57} parent=0 // pred_check_branch
    %13 = sbr.rel (0) target = $region13
  $region12: #{dbart_forward.57} parent=0 // pred_region
    _
  $region13: #{dbart_forward.57} parent=0 // pred_fallthru
    _
  %v14 = vld [vmem:[%s0] sm:$0xff]
  %v15 = vld [vmem:[%s0 + $0x8] sm:$0xff]
  %vm16 = vcmask 261120
  %v17 = vsel %vm16, %v14, 0.0
  %18 = vadd.xlane.f32.xlu0 %v17
  %v19 = vpop.xlane.xlu0 %18
  %v20 = vsel %vm16, %v15, 0.0
  %21 = vadd.xlane.f32.xlu0 %v20
  %v22 = vpop.xlane.xlu0 %21
  %v23 = vrcp.pop 32.0
  %v24 = vmul.f32 %v19, %v23
  %v25 = vmul.f32 %v22, %v23
  %v26 = vsub.f32 %v14, %v24
  %v27 = vsub.f32 %v15, %v25
  %v28 = vmul.f32 %v26, %v26
  %v29 = vmul.f32 %v27, %v27
  %v30 = vsel %vm16, %v28, 0.0
  %31 = vadd.xlane.f32.xlu0 %v30
  %v32 = vpop.xlane.xlu0 %31
  %v33 = vsel %vm16, %v29, 0.0
  %34 = vadd.xlane.f32.xlu0 %v33
  %v35 = vpop.xlane.xlu0 %34
  %v36 = vmul.f32 %v32, %v23
  %v37 = vmul.f32 %v35, %v23
  %v38 = vadd.f32 %v36, 1e-05
  %v39 = vadd.f32 %v37, 1e-05
  %v40 = vrsqrt.pop %v38
  %v41 = vrsqrt.pop %v39
  %v42 = vmul.f32 %v26, %v40
  %v43 = vmul.f32 %v27, %v41
  %v44 = vld [vmem:[%s1] sm:$0x1]
  %v46 = vlaneseq
  %v47 = vshrl.u32 %v46, 7
  %v48 = vsub.s32 0, %v47
  %v49 = vrot.slane %v44, %v48
  %v51 = vmul.f32 %v42, %v49
  %v52 = vmul.f32 %v43, %v49
  %v53 = vld [vmem:[%s2] sm:$0x1]
  %v55 = vlaneseq
  %v56 = vshrl.u32 %v55, 7
  %v57 = vsub.s32 0, %v56
  %v58 = vrot.slane %v53, %v57
  %v60 = vadd.f32 %v51, %v58
  %v61 = vadd.f32 %v52, %v58
  %62 = vst.msk [vmem:[%s3] sm:$0xff] %vm16, %v60
  %63 = vst.msk [vmem:[%s3 + $0x8] sm:$0xff] %vm16, %v61
  // Predicated region
  $region14: #{dbart_forward.57} parent=0 // pred_check
    _
  $region15: #{dbart_forward.57} parent=0 // pred_check_branch
    %65 = sbr.rel (0) target = $region17
  $region16: #{dbart_forward.57} parent=0 // pred_region
    _
  $region17: #{dbart_forward.57} parent=0 // pred_fallthru
    _
  // Predicated region
  $region18: #{dbart_forward.57} parent=0 // pred_check
    _
  $region19: #{dbart_forward.57} parent=0 // pred_check_branch
    %67 = sbr.rel (0) target = $region21
  $region20: #{dbart_forward.57} parent=0 // pred_region
    _
  $region21: #{dbart_forward.57} parent=0 // pred_fallthru
    _

// kernel: dbart_forward.61
$region0: #{dbart_forward.61}
  #allocation0 [shape = 'u32[]', space=smem, size = 0x4, offset = 0x4, fixed_abs, tag = 'smem constant byte address 0x4 - core index']
  #allocation1 [shape = 'u32[144,128]{1,0:T(1,128)}', space=vmem, size = 0x12000, scoped, tag = 'internal scratch']
  %s0 = inlined_call_operand.vmem [shape: f32[16,32], index: 0, kind: input, shape index: {}]
  %s1 = inlined_call_operand.vmem [shape: f32[16,32], index: 1, kind: input, shape index: {}]
  %s2 = inlined_call_operand.vmem [shape: f32[1,32], index: 2, kind: input, shape index: {}]
  %s3 = inlined_call_operand.vmem [shape: f32[1,32], index: 3, kind: input, shape index: {}]
  %s4 = inlined_call_operand.vmem [shape: f32[16,32], index: 4, kind: output, shape index: {}]
  %s5 = sld [smem:[#allocation0]]
  $region26: #{dbart_forward.61} parent=0
    _
  %s7 = ssub.s32 1, %s5
  %s8 = scalar_select 0, %s7, %s5
  // Predicated region
  $region2: #{dbart_forward.61} parent=0 // pred_check
    _
  $region3: #{dbart_forward.61} parent=0 // pred_check_branch
    %10 = sbr.rel (0) target = $region5
  $region4: #{dbart_forward.61} parent=0 // pred_region
    _
  $region5: #{dbart_forward.61} parent=0 // pred_fallthru
    _
  // Predicated region
  $region6: #{dbart_forward.61} parent=0 // pred_check
    _
  $region7: #{dbart_forward.61} parent=0 // pred_check_branch
    %12 = sbr.rel (0) target = $region9
  $region8: #{dbart_forward.61} parent=0 // pred_region
    _
  $region9: #{dbart_forward.61} parent=0 // pred_fallthru
    _
  // Predicated region
  $region10: #{dbart_forward.61} parent=0 // pred_check
    _
  $region11: #{dbart_forward.61} parent=0 // pred_check_branch
    %14 = sbr.rel (0) target = $region13
  $region12: #{dbart_forward.61} parent=0 // pred_region
    _
  $region13: #{dbart_forward.61} parent=0 // pred_fallthru
    _
  // Predicated region
  $region14: #{dbart_forward.61} parent=0 // pred_check
    _
  $region15: #{dbart_forward.61} parent=0 // pred_check_branch
    %16 = sbr.rel (0) target = $region17
  $region16: #{dbart_forward.61} parent=0 // pred_region
    _
  $region17: #{dbart_forward.61} parent=0 // pred_fallthru
    _
  %v17 = vld [vmem:[%s0] sm:$0xff]
  %v18 = vld [vmem:[%s0 + $0x8] sm:$0xff]
  %v19 = vld [vmem:[%s1] sm:$0xff]
  %v20 = vld [vmem:[%s1 + $0x8] sm:$0xff]
  %v21 = vadd.f32 %v17, %v19
  %v22 = vadd.f32 %v18, %v20
  %vm23 = vcmask 261120
  %v24 = vsel %vm23, %v21, 0.0
  %25 = vadd.xlane.f32.xlu0 %v24
  %v26 = vpop.xlane.xlu0 %25
  %v27 = vsel %vm23, %v22, 0.0
  %28 = vadd.xlane.f32.xlu0 %v27
  %v29 = vpop.xlane.xlu0 %28
  %v30 = vrcp.pop 32.0
  %v31 = vmul.f32 %v26, %v30
  %v32 = vmul.f32 %v29, %v30
  %v33 = vsub.f32 %v21, %v31
  %v34 = vsub.f32 %v22, %v32
  %v35 = vmul.f32 %v33, %v33
  %v36 = vmul.f32 %v34, %v34
  %v37 = vsel %vm23, %v35, 0.0
  %38 = vadd.xlane.f32.xlu0 %v37
  %v39 = vpop.xlane.xlu0 %38
  %v40 = vsel %vm23, %v36, 0.0
  %41 = vadd.xlane.f32.xlu0 %v40
  %v42 = vpop.xlane.xlu0 %41
  %v43 = vmul.f32 %v39, %v30
  %v44 = vmul.f32 %v42, %v30
  %v45 = vadd.f32 %v43, 1e-05
  %v46 = vadd.f32 %v44, 1e-05
  %v47 = vrsqrt.pop %v45
  %v48 = vrsqrt.pop %v46
  %v49 = vmul.f32 %v33, %v47
  %v50 = vmul.f32 %v34, %v48
  %v51 = vld [vmem:[%s2] sm:$0x1]
  %v53 = vlaneseq
  %v54 = vshrl.u32 %v53, 7
  %v55 = vsub.s32 0, %v54
  %v56 = vrot.slane %v51, %v55
  %v58 = vmul.f32 %v49, %v56
  %v59 = vmul.f32 %v50, %v56
  %v60 = vld [vmem:[%s3] sm:$0x1]
  %v62 = vlaneseq
  %v63 = vshrl.u32 %v62, 7
  %v64 = vsub.s32 0, %v63
  %v65 = vrot.slane %v60, %v64
  %v67 = vadd.f32 %v58, %v65
  %v68 = vadd.f32 %v59, %v65
  %69 = vst.msk [vmem:[%s4] sm:$0xff] %vm23, %v67
  %70 = vst.msk [vmem:[%s4 + $0x8] sm:$0xff] %vm23, %v68
  // Predicated region
  $region18: #{dbart_forward.61} parent=0 // pred_check
    _
  $region19: #{dbart_forward.61} parent=0 // pred_check_branch
    %72 = sbr.rel (0) target = $region21
  $region20: #{dbart_forward.61} parent=0 // pred_region
    _
  $region21: #{dbart_forward.61} parent=0 // pred_fallthru
    _
  // Predicated region
  $region22: #{dbart_forward.61} parent=0 // pred_check
    _
  $region23: #{dbart_forward.61} parent=0 // pred_check_branch
    %74 = sbr.rel (0) target = $region25
  $region24: #{dbart_forward.61} parent=0 // pred_region
    _
  $region25: #{dbart_forward.61} parent=0 // pred_fallthru
    _

// kernel: dbart_forward.59
$region0: #{dbart_forward.59}
  #allocation0 [shape = 'u32[]', space=smem, size = 0x4, offset = 0x4, fixed_abs, tag = 'smem constant byte address 0x4 - core index']
  #allocation1 [shape = 'u32[144,128]{1,0:T(1,128)}', space=vmem, size = 0x12000, scoped, tag = 'internal scratch']
  %s0 = inlined_call_operand.vmem [shape: bf16[2,8,32], index: 0, kind: input, shape index: {}]
  %s1 = inlined_call_operand.vmem [shape: bf16[2,8,32], index: 1, kind: input, shape index: {}]
  %s2 = inlined_call_operand.vmem [shape: bf16[2,8,32], index: 2, kind: input, shape index: {}]
  %s3 = inlined_call_operand.vmem [shape: f32[2,8,8], index: 3, kind: input, shape index: {}]
  %s4 = inlined_call_operand.vmem [shape: f32[2,8,32], index: 4, kind: output, shape index: {}]
  %s5 = sld [smem:[#allocation0]]
  $region49: #{dbart_forward.59} parent=0
    _
  %s7 = ssub.s32 1, %s5
  %s8 = scalar_select 0, %s7, %s5
  loop: start=0, step=1, limit=4
  $region2: #{dbart_forward.59} parent=0 // loop_pre_header
    _
  $region3: #{dbart_forward.59} parent=0 // loop_header
    %s10 = sphi 0, %s14
    %p11 = scmp.ge.s32.totalorder %s10, 4
    %s20 = sphi 0, %s22
    %s23 = sphi 0, %s20
    %s24 = sphi 0, %s23
    %s40 = sphi 0, %s24
    %s46 = sphi 0, %s48
    %s49 = sphi 0, %s46
    %s50 = sphi 0, %s49
    %s66 = sphi 0, %s50
    %s72 = sphi 0, %s74
    %s75 = sphi 0, %s72
    %s76 = sphi 0, %s75
    %s92 = sphi 0, %s76
    %s98 = sphi 0, %s100
    %s101 = sphi 0, %s98
    %s102 = sphi 0, %s101
    %s118 = sphi 0, %s102
    %s124 = sphi 0, %s126
    %s127 = sphi 0, %s124
    %s128 = sphi 0, %s127
    %s144 = sphi 0, %s128
  $region4: #{dbart_forward.59} parent=0 // loop_header_branch
    %13 = sbr.rel (%p11) target = $region8
  $region5: #{dbart_forward.59} parent=0 // loop_body
    %s15 = ssub.s32 %s10, 1
    %s16 = ssub.s32 %s10, 2
    %s17 = sadd.s32 %s10, 1
    %s18 = ssub.s32 %s10, %s17
    %p19 = scmp.eq.s32.totalorder %s18, 0
    %s21 = sadd.s32 %s20, 1
    %s22 = scalar_select %p19, %s20, %s21
    %p25 = pneg %p19
    %p26 = scmp.eq.s32.totalorder %s10, 1
    %p27 = por %p25, %p26
    %p28 = scmp.ne.s32.totalorder %s20, %s23
    %p29 = scmp.eq.s32.totalorder %s10, 0
    %p30 = por %p28, %p29
    %p31 = scmp.ne.s32.totalorder %s20, %s23
    %p32 = scmp.eq.s32.totalorder %s15, 1
    %p33 = por %p31, %p32
    %p34 = scmp.ne.s32.totalorder %s23, %s24
    %p35 = scmp.eq.s32.totalorder %s15, 0
    %p36 = por %p34, %p35
    %p37 = scmp.ne.s32.totalorder %s23, %s24
    %p38 = scmp.eq.s32.totalorder %s16, 1
    %p39 = por %p37, %p38
    %p41 = scmp.ne.s32.totalorder %s24, %s40
    %p42 = scmp.eq.s32.totalorder %s16, 0
    %p43 = por %p41, %p42
    %s44 = ssub.s32 %s10, %s17
    %p45 = scmp.eq.s32.totalorder %s44, 0
    %s47 = sadd.s32 %s46, 1
    %s48 = scalar_select %p45, %s46, %s47
    %p51 = pneg %p45
    %p52 = scmp.eq.s32.totalorder %s10, 1
    %p53 = por %p51, %p52
    %p54 = scmp.ne.s32.totalorder %s46, %s49
    %p55 = scmp.eq.s32.totalorder %s10, 0
    %p56 = por %p54, %p55
    %p57 = scmp.ne.s32.totalorder %s46, %s49
    %p58 = scmp.eq.s32.totalorder %s15, 1
    %p59 = por %p57, %p58
    %p60 = scmp.ne.s32.totalorder %s49, %s50
    %p61 = scmp.eq.s32.totalorder %s15, 0
    %p62 = por %p60, %p61
    %p63 = scmp.ne.s32.totalorder %s49, %s50
    %p64 = scmp.eq.s32.totalorder %s16, 1
    %p65 = por %p63, %p64
    %p67 = scmp.ne.s32.totalorder %s50, %s66
    %p68 = scmp.eq.s32.totalorder %s16, 0
    %p69 = por %p67, %p68
    %s70 = ssub.s32 %s10, %s17
    %p71 = scmp.eq.s32.totalorder %s70, 0
    %s73 = sadd.s32 %s72, 1
    %s74 = scalar_select %p71, %s72, %s73
    %p77 = pneg %p71
    %p78 = scmp.eq.s32.totalorder %s10, 1
    %p79 = por %p77, %p78
    %p80 = scmp.ne.s32.totalorder %s72, %s75
    %p81 = scmp.eq.s32.totalorder %s10, 0
    %p82 = por %p80, %p81
    %p83 = scmp.ne.s32.totalorder %s72, %s75
    %p84 = scmp.eq.s32.totalorder %s15, 1
    %p85 = por %p83, %p84
    %p86 = scmp.ne.s32.totalorder %s75, %s76
    %p87 = scmp.eq.s32.totalorder %s15, 0
    %p88 = por %p86, %p87
    %p89 = scmp.ne.s32.totalorder %s75, %s76
    %p90 = scmp.eq.s32.totalorder %s16, 1
    %p91 = por %p89, %p90
    %p93 = scmp.ne.s32.totalorder %s76, %s92
    %p94 = scmp.eq.s32.totalorder %s16, 0
    %p95 = por %p93, %p94
    %s96 = ssub.s32 %s10, %s17
    %p97 = scmp.eq.s32.totalorder %s96, 0
    %s99 = sadd.s32 %s98, 1
    %s100 = scalar_select %p97, %s98, %s99
    %p103 = pneg %p97
    %p104 = scmp.eq.s32.totalorder %s10, 1
    %p105 = por %p103, %p104
    %p106 = scmp.ne.s32.totalorder %s98, %s101
    %p107 = scmp.eq.s32.totalorder %s10, 0
    %p108 = por %p106, %p107
    %p109 = scmp.ne.s32.totalorder %s98, %s101
    %p110 = scmp.eq.s32.totalorder %s15, 1
    %p111 = por %p109, %p110
    %p112 = scmp.ne.s32.totalorder %s101, %s102
    %p113 = scmp.eq.s32.totalorder %s15, 0
    %p114 = por %p112, %p113
    %p115 = scmp.ne.s32.totalorder %s101, %s102
    %p116 = scmp.eq.s32.totalorder %s16, 1
    %p117 = por %p115, %p116
    %p119 = scmp.ne.s32.totalorder %s102, %s118
    %p120 = scmp.eq.s32.totalorder %s16, 0
    %p121 = por %p119, %p120
    %s122 = ssub.s32 %s10, %s17
    %p123 = scmp.eq.s32.totalorder %s122, 0
    %s125 = sadd.s32 %s124, 1
    %s126 = scalar_select %p123, %s124, %s125
    %p129 = pneg %p123
    %p130 = scmp.eq.s32.totalorder %s10, 1
    %p131 = por %p129, %p130
    %p132 = scmp.ne.s32.totalorder %s124, %s127
    %p133 = scmp.eq.s32.totalorder %s10, 0
    %p134 = por %p132, %p133
    %p135 = scmp.ne.s32.totalorder %s124, %s127
    %p136 = scmp.eq.s32.totalorder %s15, 1
    %p137 = por %p135, %p136
    %p138 = scmp.ne.s32.totalorder %s127, %s128
    %p139 = scmp.eq.s32.totalorder %s15, 0
    %p140 = por %p138, %p139
    %p141 = scmp.ne.s32.totalorder %s127, %s128
    %p142 = scmp.eq.s32.totalorder %s16, 1
    %p143 = por %p141, %p142
    %p145 = scmp.ne.s32.totalorder %s128, %s144
    %p146 = scmp.eq.s32.totalorder %s16, 0
    %p147 = por %p145, %p146
    %p148 = scmp.le.s32.totalorder 1, %s10
    %p149 = scmp.lt.s32.totalorder %s10, 3
    %p150 = pnand %p148, %p149
    %p151 = pneg %p150
    // Predicated region
    $region9: #{dbart_forward.59} parent=5 // pred_check
      _
    $region10: #{dbart_forward.59} parent=5 // pred_check_branch
      %153 = sbr.rel (%p150) target = $region12
    $region11: #{dbart_forward.59} parent=5 // pred_region
      %s154 = ssub.s32 %s10, 1
    $region12: #{dbart_forward.59} parent=5 // pred_fallthru
      _
    %p155 = scmp.lt.s32.totalorder %s10, 2
    // Predicated region
    $region13: #{dbart_forward.59} parent=5 // pred_check
      %p156 = pneg %p155
    $region14: #{dbart_forward.59} parent=5 // pred_check_branch
      %158 = sbr.rel (%p156) target = $region16
    $region15: #{dbart_forward.59} parent=5 // pred_region
      // Predicated region
      $region17: #{dbart_forward.59} parent=15 // pred_check
        %p159 = pneg %p30
      $region18: #{dbart_forward.59} parent=15 // pred_check_branch
        %161 = sbr.rel (%p159) target = $region20
      $region19: #{dbart_forward.59} parent=15 // pred_region
        %p162 = scmp.lt.s32.totalorder %s10, 1
        %s163 = scalar_select %p162, %s10, 1
        %s164 = smul.addr %s163, 4
        %s165 = scalar_lea.vmem %s0, %s164
      $region20: #{dbart_forward.59} parent=15 // pred_fallthru
        _
      // Predicated region
      $region21: #{dbart_forward.59} parent=15 // pred_check
        %p166 = pneg %p56
      $region22: #{dbart_forward.59} parent=15 // pred_check_branch
        %168 = sbr.rel (%p166) target = $region24
      $region23: #{dbart_forward.59} parent=15 // pred_region
        %p169 = scmp.lt.s32.totalorder %s10, 1
        %s170 = scalar_select %p169, %s10, 1
        %s171 = smul.addr %s170, 4
        %s172 = scalar_lea.vmem %s1, %s171
      $region24: #{dbart_forward.59} parent=15 // pred_fallthru
        _
      // Predicated region
      $region25: #{dbart_forward.59} parent=15 // pred_check
        %p173 = pneg %p82
      $region26: #{dbart_forward.59} parent=15 // pred_check_branch
        %175 = sbr.rel (%p173) target = $region28
      $region27: #{dbart_forward.59} parent=15 // pred_region
        %p176 = scmp.lt.s32.totalorder %s10, 1
        %s177 = scalar_select %p176, %s10, 1
        %s178 = smul.addr %s177, 4
        %s179 = scalar_lea.vmem %s2, %s178
      $region28: #{dbart_forward.59} parent=15 // pred_fallthru
        _
      // Predicated region
      $region29: #{dbart_forward.59} parent=15 // pred_check
        %p180 = pneg %p108
      $region30: #{dbart_forward.59} parent=15 // pred_check_branch
        %182 = sbr.rel (%p180) target = $region32
      $region31: #{dbart_forward.59} parent=15 // pred_region
        %p183 = scmp.lt.s32.totalorder %s10, 1
        %s184 = scalar_select %p183, %s10, 1
        %s185 = smul.addr %s184, 8
        %s186 = scalar_lea.vmem %s3, %s185
      $region32: #{dbart_forward.59} parent=15 // pred_fallthru
        _
    $region16: #{dbart_forward.59} parent=5 // pred_fallthru
      _
    %p187 = scmp.le.s32.totalorder 1, %s10
    %p188 = scmp.lt.s32.totalorder %s10, 3
    %p189 = pnand %p187, %p188
    %p190 = pneg %p189
    // Predicated region
    $region33: #{dbart_forward.59} parent=5 // pred_check
      _
    $region34: #{dbart_forward.59} parent=5 // pred_check_branch
      %192 = sbr.rel (%p189) target = $region36
    $region35: #{dbart_forward.59} parent=5 // pred_region
      %s193 = ssub.s32 %s10, 1
      %p194 = scmp.lt.s32.totalorder %s15, 1
      %s195 = scalar_select %p194, %s15, 1
      %s196 = smul.addr %s195, 4
      %s197 = scalar_lea.vmem %s0, %s196
      %p198 = pneg %p36
      %p199 = pneg %p33
      %p200 = scmp.lt.s32.totalorder %s15, 1
      %s201 = scalar_select %p200, %s15, 1
      %s202 = smul.addr %s201, 4
      %s203 = scalar_lea.vmem %s1, %s202
      %p204 = pneg %p62
      %p205 = pneg %p59
      %p206 = scmp.lt.s32.totalorder %s15, 1
      %s207 = scalar_select %p206, %s15, 1
      %s208 = smul.addr %s207, 4
      %s209 = scalar_lea.vmem %s2, %s208
      %p210 = pneg %p88
      %p211 = pneg %p85
      %p212 = scmp.lt.s32.totalorder %s15, 1
      %s213 = scalar_select %p212, %s15, 1
      %s214 = smul.addr %s213, 8
      %s215 = scalar_lea.vmem %s3, %s214
      %p216 = pneg %p114
      %p217 = pneg %p111
      %p218 = pneg %p140
      %p219 = pneg %p137
      %p220 = scmp.lt.s32.totalorder %s15, 1
      %s221 = scalar_select %p220, %s15, 1
      %s222 = smul.addr %s221, 8
      %s223 = scalar_lea.vmem %s4, %s222
      %p224 = scmp.lt.s32.totalorder %s15, 1
      %s225 = scalar_select %p224, %s15, 1
      %s226 = smul.addr %s225, 4
      %s227 = scalar_lea.vmem %s0, %s226
      %p228 = scmp.lt.s32.totalorder %s15, 1
      %s229 = scalar_select %p228, %s15, 1
      %s230 = smul.addr %s229, 4
      %s231 = scalar_lea.vmem %s1, %s230
      %p232 = scmp.lt.s32.totalorder %s15, 1
      %s233 = scalar_select %p232, %s15, 1
      %s234 = smul.addr %s233, 4
      %s235 = scalar_lea.vmem %s2, %s234
      %p236 = scmp.lt.s32.totalorder %s15, 1
      %s237 = scalar_select %p236, %s15, 1
      %s238 = smul.addr %s237, 8
      %s239 = scalar_lea.vmem %s3, %s238
      %p240 = scmp.lt.s32.totalorder %s15, 1
      %s241 = scalar_select %p240, %s15, 1
      %s242 = smul.addr %s241, 8
      %s243 = scalar_lea.vmem %s4, %s242
      %v245 = vld [vmem:[%s227] sm:$0xf]
      %v246 = vld [vmem:[%s231] sm:$0xf]
      %v247 = vld [vmem:[%s235] sm:$0xf]
      %v248 = vld [vmem:[%s239] sm:$0xff]
      %vm249 = vcmask 64512
      %v251 = vsel %vm249, %v245, 0
      %v254 = vsel %vm249, %v246, 0
      %256 = vmatprep.subr.bf16.mxu0 0
      %257 = vmatpush1.bf16.xpose.msra.mxu0 %v254
      %258 = vmatprep.subr.bf16.mxu0 0
      %259 = vmatpush1.bf16.xpose.msra.mxu0 0
      %260 = vmatprep.subr.bf16.mxu0 0
      %261 = vmatpush1.bf16.xpose.msra.mxu0 0
      %262 = vmatprep.subr.bf16.mxu0 0
      %263 = vmatpush1.bf16.xpose.msra.mxu0 0
      %264 = vmatprep.subr.bf16.mxu0 0
      %265 = vmatpush1.bf16.xpose.msra.mxu0 0
      %266 = vmatprep.subr.bf16.mxu0 0
      %267 = vmatpush1.bf16.xpose.msra.mxu0 0
      %268 = vmatprep.subr.bf16.mxu0 0
      %269 = vmatpush1.bf16.xpose.msra.mxu0 0
      %270 = vmatprep.subr.bf16.mxu0 0
      %271 = vmatpush1.bf16.xpose.msra.mxu0 0
      %272 = vmatprep.subr.bf16.mxu0 0
      %273 = vmatpush1.bf16.xpose.msra.mxu0 0
      %274 = vmatprep.subr.bf16.mxu0 0
      %275 = vmatpush1.bf16.xpose.msra.mxu0 0
      %276 = vmatprep.subr.bf16.mxu0 0
      %277 = vmatpush1.bf16.xpose.msra.mxu0 0
      %278 = vmatprep.subr.bf16.mxu0 0
      %279 = vmatpush1.bf16.xpose.msra.mxu0 0
      %280 = vmatprep.subr.bf16.mxu0 0
      %281 = vmatpush1.bf16.xpose.msra.mxu0 0
      %282 = vmatprep.subr.bf16.mxu0 0
      %283 = vmatpush1.bf16.xpose.msra.mxu0 0
      %284 = vmatprep.subr.bf16.mxu0 0
      %285 = vmatpush1.bf16.xpose.msra.mxu0 0
      %286 = vmatprep.subr.bf16.mxu0 0
      %287 = vmatpush1.bf16.xpose.msra.mxu0 0
      %288 = vmatprep.mubr.bf16.mxu0 0
      %289 = vmatmul.mubr.bf16.gmra.mrb[0].mxu0 %v251
      %v290 = vpop.f32.mrb[0].mxu0
      %v291 = vadd.f32 0.0, %v290
      %v292 = vpop.f32.mrb[0].mxu0
      %v293 = vpop.f32.mrb[0].mxu0
      %v294 = vpop.f32.mrb[0].mxu0
      %295 = vdwg.mxu0
      %v296 = vmul.f32 %v291, 0.35355338
      %v297 = vadd.f32 %v296, %v248
      %v298 = vsel %vm249, %v297, -inf
      %299 = vmax.xlane.f32.xlu0 %v298
      %v300 = vpop.xlane.xlu0 %299
      %v301 = vsub.f32 %v297, %v300
      %v302 = vmul.f32 %v301, 1.442695
      %v303 = vpow.pop %v302
      %v304 = vsel %vm249, %v303, 0.0
      %305 = vadd.xlane.f32.xlu0 %v304
      %v306 = vpop.xlane.xlu0 %305
      %v307 = vpack.c.bf16 %v303, %v303
      %v309 = vsel %vm249, %v307, 0
      %vm311 = vcmask 1043456
      %v313 = vsel %vm311, %v247, 0
      %315 = vmatprep.subr.bf16.mxu0 0
      %316 = vmatpush1.bf16.msra.mxu0 %v313
      %317 = vmatprep.subr.bf16.mxu0 0
      %318 = vmatpush1.bf16.msra.mxu0 0
      %319 = vmatprep.subr.bf16.mxu0 0
      %320 = vmatpush1.bf16.msra.mxu0 0
      %321 = vmatprep.subr.bf16.mxu0 0
      %322 = vmatpush1.bf16.msra.mxu0 0
      %323 = vmatprep.subr.bf16.mxu0 0
      %324 = vmatpush1.bf16.msra.mxu0 0
      %325 = vmatprep.subr.bf16.mxu0 0
      %326 = vmatpush1.bf16.msra.mxu0 0
      %327 = vmatprep.subr.bf16.mxu0 0
      %328 = vmatpush1.bf16.msra.mxu0 0
      %329 = vmatprep.subr.bf16.mxu0 0
      %330 = vmatpush1.bf16.msra.mxu0 0
      %331 = vmatprep.subr.bf16.mxu0 0
      %332 = vmatpush1.bf16.msra.mxu0 0
      %333 = vmatprep.subr.bf16.mxu0 0
      %334 = vmatpush1.bf16.msra.mxu0 0
      %335 = vmatprep.subr.bf16.mxu0 0
      %336 = vmatpush1.bf16.msra.mxu0 0
      %337 = vmatprep.subr.bf16.mxu0 0
      %338 = vmatpush1.bf16.msra.mxu0 0
      %339 = vmatprep.subr.bf16.mxu0 0
      %340 = vmatpush1.bf16.msra.mxu0 0
      %341 = vmatprep.subr.bf16.mxu0 0
      %342 = vmatpush1.bf16.msra.mxu0 0
      %343 = vmatprep.subr.bf16.mxu0 0
      %344 = vmatpush1.bf16.msra.mxu0 0
      %345 = vmatprep.subr.bf16.mxu0 0
      %346 = vmatpush1.bf16.msra.mxu0 0
      %347 = vmatprep.mubr.bf16.mxu0 0
      %348 = vmatmul.mubr.bf16.gmra.mrb[0].mxu0 %v309
      %v349 = vpop.f32.mrb[0].mxu0
      %v350 = vadd.f32 0.0, %v349
      %v351 = vpop.f32.mrb[0].mxu0
      %v352 = vpop.f32.mrb[0].mxu0
      %v353 = vpop.f32.mrb[0].mxu0
      %354 = vdwg.mxu0
      %v355 = vrcp.pop %v306
      %v356 = vmul.f32 %v350, %v355
      %v358 = vunpack.c.l.b16 %v245
      %v359 = vpack.c.b16 %v358, %v358
      %360 = vrot.lane.b32.xlu0 %v359, 120
      %v361 = vpop.permute.xlu0 %360
      %v363 = vunpack.c.l.b16 %v246
      %v364 = vpack.c.b16 %v363, %v363
      %365 = vrot.lane.b32.xlu0 %v364, 120
      %v366 = vpop.permute.xlu0 %365
      %v368 = vsel %vm249, %v361, 0
      %v371 = vsel %vm249, %v366, 0
      %373 = vmatprep.subr.bf16.mxu0 0
      %374 = vmatpush1.bf16.xpose.msra.mxu0 %v371
      %375 = vmatprep.subr.bf16.mxu0 0
      %376 = vmatpush1.bf16.xpose.msra.mxu0 0
      %377 = vmatprep.subr.bf16.mxu0 0
      %378 = vmatpush1.bf16.xpose.msra.mxu0 0
      %379 = vmatprep.subr.bf16.mxu0 0
      %380 = vmatpush1.bf16.xpose.msra.mxu0 0
      %381 = vmatprep.subr.bf16.mxu0 0
      %382 = vmatpush1.bf16.xpose.msra.mxu0 0
      %383 = vmatprep.subr.bf16.mxu0 0
      %384 = vmatpush1.bf16.xpose.msra.mxu0 0
      %385 = vmatprep.subr.bf16.mxu0 0
      %386 = vmatpush1.bf16.xpose.msra.mxu0 0
      %387 = vmatprep.subr.bf16.mxu0 0
      %388 = vmatpush1.bf16.xpose.msra.mxu0 0
      %389 = vmatprep.subr.bf16.mxu0 0
      %390 = vmatpush1.bf16.xpose.msra.mxu0 0
      %391 = vmatprep.subr.bf16.mxu0 0
      %392 = vmatpush1.bf16.xpose.msra.mxu0 0
      %393 = vmatprep.subr.bf16.mxu0 0
      %394 = vmatpush1.bf16.xpose.msra.mxu0 0
      %395 = vmatprep.subr.bf16.mxu0 0
      %396 = vmatpush1.bf16.xpose.msra.mxu0 0
      %397 = vmatprep.subr.bf16.mxu0 0
      %398 = vmatpush1.bf16.xpose.msra.mxu0 0
      %399 = vmatprep.subr.bf16.mxu0 0
      %400 = vmatpush1.bf16.xpose.msra.mxu0 0
      %401 = vmatprep.subr.bf16.mxu0 0
      %402 = vmatpush1.bf16.xpose.msra.mxu0 0
      %403 = vmatprep.subr.bf16.mxu0 0
      %404 = vmatpush1.bf16.xpose.msra.mxu0 0
      %405 = vmatprep.mubr.bf16.mxu0 0
      %406 = vmatmul.mubr.bf16.gmra.mrb[0].mxu0 %v368
      %v407 = vpop.f32.mrb[0].mxu0
      %v408 = vadd.f32 0.0, %v407
      %v409 = vpop.f32.mrb[0].mxu0
      %v410 = vpop.f32.mrb[0].mxu0
      %v411 = vpop.f32.mrb[0].mxu0
      %412 = vdwg.mxu0
      %v413 = vmul.f32 %v408, 0.35355338
      %v414 = vadd.f32 %v413, %v248
      %v415 = vsel %vm249, %v414, -inf
      %416 = vmax.xlane.f32.xlu0 %v415
      %v417 = vpop.xlane.xlu0 %416
      %v418 = vsub.f32 %v414, %v417
      %v419 = vmul.f32 %v418, 1.442695
      %v420 = vpow.pop %v419
      %v421 = vsel %vm249, %v420, 0.0
      %422 = vadd.xlane.f32.xlu0 %v421
      %v423 = vpop.xlane.xlu0 %422
      %v424 = vpack.c.bf16 %v420, %v420
      %v426 = vunpack.c.l.b16 %v247
      %v427 = vpack.c.b16 %v426, %v426
      %428 = vrot.lane.b32.xlu0 %v427, 120
      %v429 = vpop.permute.xlu0 %428
      %v431 = vsel %vm249, %v424, 0
      %v434 = vsel %vm311, %v429, 0
      %436 = vmatprep.subr.bf16.mxu0 0
      %437 = vmatpush1.bf16.msra.mxu0 %v434
      %438 = vmatprep.subr.bf16.mxu0 0
      %439 = vmatpush1.bf16.msra.mxu0 0
      %440 = vmatprep.subr.bf16.mxu0 0
      %441 = vmatpush1.bf16.msra.mxu0 0
      %442 = vmatprep.subr.bf16.mxu0 0
      %443 = vmatpush1.bf16.msra.mxu0 0
      %444 = vmatprep.subr.bf16.mxu0 0
      %445 = vmatpush1.bf16.msra.mxu0 0
      %446 = vmatprep.subr.bf16.mxu0 0
      %447 = vmatpush1.bf16.msra.mxu0 0
      %448 = vmatprep.subr.bf16.mxu0 0
      %449 = vmatpush1.bf16.msra.mxu0 0
      %450 = vmatprep.subr.bf16.mxu0 0
      %451 = vmatpush1.bf16.msra.mxu0 0
      %452 = vmatprep.subr.bf16.mxu0 0
      %453 = vmatpush1.bf16.msra.mxu0 0
      %454 = vmatprep.subr.bf16.mxu0 0
      %455 = vmatpush1.bf16.msra.mxu0 0
      %456 = vmatprep.subr.bf16.mxu0 0
      %457 = vmatpush1.bf16.msra.mxu0 0
      %458 = vmatprep.subr.bf16.mxu0 0
      %459 = vmatpush1.bf16.msra.mxu0 0
      %460 = vmatprep.subr.bf16.mxu0 0
      %461 = vmatpush1.bf16.msra.mxu0 0
      %462 = vmatprep.subr.bf16.mxu0 0
      %463 = vmatpush1.bf16.msra.mxu0 0
      %464 = vmatprep.subr.bf16.mxu0 0
      %465 = vmatpush1.bf16.msra.mxu0 0
      %466 = vmatprep.subr.bf16.mxu0 0
      %467 = vmatpush1.bf16.msra.mxu0 0
      %468 = vmatprep.mubr.bf16.mxu0 0
      %469 = vmatmul.mubr.bf16.gmra.mrb[0].mxu0 %v431
      %v470 = vpop.f32.mrb[0].mxu0
      %v471 = vadd.f32 0.0, %v470
      %v472 = vpop.f32.mrb[0].mxu0
      %v473 = vpop.f32.mrb[0].mxu0
      %v474 = vpop.f32.mrb[0].mxu0
      %475 = vdwg.mxu0
      %v476 = vrcp.pop %v423
      %v477 = vmul.f32 %v471, %v476
      %478 = vrot.lane.b32.xlu0 %v359, 112
      %v479 = vpop.permute.xlu0 %478
      %480 = vrot.lane.b32.xlu0 %v364, 112
      %v481 = vpop.permute.xlu0 %480
      %v483 = vsel %vm249, %v479, 0
      %v486 = vsel %vm249, %v481, 0
      %488 = vmatprep.subr.bf16.mxu0 0
      %489 = vmatpush1.bf16.xpose.msra.mxu0 %v486
      %490 = vmatprep.subr.bf16.mxu0 0
      %491 = vmatpush1.bf16.xpose.msra.mxu0 0
      %492 = vmatprep.subr.bf16.mxu0 0
      %493 = vmatpush1.bf16.xpose.msra.mxu0 0
      %494 = vmatprep.subr.bf16.mxu0 0
      %495 = vmatpush1.bf16.xpose.msra.mxu0 0
      %496 = vmatprep.subr.bf16.mxu0 0
      %497 = vmatpush1.bf16.xpose.msra.mxu0 0
      %498 = vmatprep.subr.bf16.mxu0 0
      %499 = vmatpush1.bf16.xpose.msra.mxu0 0
      %500 = vmatprep.subr.bf16.mxu0 0
      %501 = vmatpush1.bf16.xpose.msra.mxu0 0
      %502 = vmatprep.subr.bf16.mxu0 0
      %503 = vmatpush1.bf16.xpose.msra.mxu0 0
      %504 = vmatprep.subr.bf16.mxu0 0
      %505 = vmatpush1.bf16.xpose.msra.mxu0 0
      %506 = vmatprep.subr.bf16.mxu0 0
      %507 = vmatpush1.bf16.xpose.msra.mxu0 0
      %508 = vmatprep.subr.bf16.mxu0 0
      %509 = vmatpush1.bf16.xpose.msra.mxu0 0
      %510 = vmatprep.subr.bf16.mxu0 0
      %511 = vmatpush1.bf16.xpose.msra.mxu0 0
      %512 = vmatprep.subr.bf16.mxu0 0
      %513 = vmatpush1.bf16.xpose.msra.mxu0 0
      %514 = vmatprep.subr.bf16.mxu0 0
      %515 = vmatpush1.bf16.xpose.msra.mxu0 0
      %516 = vmatprep.subr.bf16.mxu0 0
      %517 = vmatpush1.bf16.xpose.msra.mxu0 0
      %518 = vmatprep.subr.bf16.mxu0 0
      %519 = vmatpush1.bf16.xpose.msra.mxu0 0
      %520 = vmatprep.mubr.bf16.mxu0 0
      %521 = vmatmul.mubr.bf16.gmra.mrb[0].mxu0 %v483
      %v522 = vpop.f32.mrb[0].mxu0
      %v523 = vadd.f32 0.0, %v522
      %v524 = vpop.f32.mrb[0].mxu0
      %v525 = vpop.f32.mrb[0].mxu0
      %v526 = vpop.f32.mrb[0].mxu0
      %527 = vdwg.mxu0
      %v528 = vmul.f32 %v523, 0.35355338
      %v529 = vadd.f32 %v528, %v248
      %v530 = vsel %vm249, %v529, -inf
      %531 = vmax.xlane.f32.xlu0 %v530
      %v532 = vpop.xlane.xlu0 %531
      %v533 = vsub.f32 %v529, %v532
      %v534 = vmul.f32 %v533, 1.442695
      %v535 = vpow.pop %v534
      %v536 = vsel %vm249, %v535, 0.0
      %537 = vadd.xlane.f32.xlu0 %v536
      %v538 = vpop.xlane.xlu0 %537
      %v539 = vpack.c.bf16 %v535, %v535
      %540 = vrot.lane.b32.xlu0 %v427, 112
      %v541 = vpop.permute.xlu0 %540
      %v543 = vsel %vm249, %v539, 0
      %v546 = vsel %vm311, %v541, 0
      %548 = vmatprep.subr.bf16.mxu0 0
      %549 = vmatpush1.bf16.msra.mxu0 %v546
      %550 = vmatprep.subr.bf16.mxu0 0
      %551 = vmatpush1.bf16.msra.mxu0 0
      %552 = vmatprep.subr.bf16.mxu0 0
      %553 = vmatpush1.bf16.msra.mxu0 0
      %554 = vmatprep.subr.bf16.mxu0 0
      %555 = vmatpush1.bf16.msra.mxu0 0
      %556 = vmatprep.subr.bf16.mxu0 0
      %557 = vmatpush1.bf16.msra.mxu0 0
      %558 = vmatprep.subr.bf16.mxu0 0
      %559 = vmatpush1.bf16.msra.mxu0 0
      %560 = vmatprep.subr.bf16.mxu0 0
      %561 = vmatpush1.bf16.msra.mxu0 0
      %562 = vmatprep.subr.bf16.mxu0 0
      %563 = vmatpush1.bf16.msra.mxu0 0
      %564 = vmatprep.subr.bf16.mxu0 0
      %565 = vmatpush1.bf16.msra.mxu0 0
      %566 = vmatprep.subr.bf16.mxu0 0
      %567 = vmatpush1.bf16.msra.mxu0 0
      %568 = vmatprep.subr.bf16.mxu0 0
      %569 = vmatpush1.bf16.msra.mxu0 0
      %570 = vmatprep.subr.bf16.mxu0 0
      %571 = vmatpush1.bf16.msra.mxu0 0
      %572 = vmatprep.subr.bf16.mxu0 0
      %573 = vmatpush1.bf16.msra.mxu0 0
      %574 = vmatprep.subr.bf16.mxu0 0
      %575 = vmatpush1.bf16.msra.mxu0 0
      %576 = vmatprep.subr.bf16.mxu0 0
      %577 = vmatpush1.bf16.msra.mxu0 0
      %578 = vmatprep.subr.bf16.mxu0 0
      %579 = vmatpush1.bf16.msra.mxu0 0
      %580 = vmatprep.mubr.bf16.mxu0 0
      %581 = vmatmul.mubr.bf16.gmra.mrb[0].mxu0 %v543
      %v582 = vpop.f32.mrb[0].mxu0
      %v583 = vadd.f32 0.0, %v582
      %v584 = vpop.f32.mrb[0].mxu0
      %v585 = vpop.f32.mrb[0].mxu0
      %v586 = vpop.f32.mrb[0].mxu0
      %587 = vdwg.mxu0
      %v588 = vrcp.pop %v538
      %v589 = vmul.f32 %v583, %v588
      %590 = vrot.lane.b32.xlu0 %v359, 104
      %v591 = vpop.permute.xlu0 %590
      %592 = vrot.lane.b32.xlu0 %v364, 104
      %v593 = vpop.permute.xlu0 %592
      %v595 = vsel %vm249, %v591, 0
      %v598 = vsel %vm249, %v593, 0
      %600 = vmatprep.subr.bf16.mxu0 0
      %601 = vmatpush1.bf16.xpose.msra.mxu0 %v598
      %602 = vmatprep.subr.bf16.mxu0 0
      %603 = vmatpush1.bf16.xpose.msra.mxu0 0
      %604 = vmatprep.subr.bf16.mxu0 0
      %605 = vmatpush1.bf16.xpose.msra.mxu0 0
      %606 = vmatprep.subr.bf16.mxu0 0
      %607 = vmatpush1.bf16.xpose.msra.mxu0 0
      %608 = vmatprep.subr.bf16.mxu0 0
      %609 = vmatpush1.bf16.xpose.msra.mxu0 0
      %610 = vmatprep.subr.bf16.mxu0 0
      %611 = vmatpush1.bf16.xpose.msra.mxu0 0
      %612 = vmatprep.subr.bf16.mxu0 0
      %613 = vmatpush1.bf16.xpose.msra.mxu0 0
      %614 = vmatprep.subr.bf16.mxu0 0
      %615 = vmatpush1.bf16.xpose.msra.mxu0 0
      %616 = vmatprep.subr.bf16.mxu0 0
      %617 = vmatpush1.bf16.xpose.msra.mxu0 0
      %618 = vmatprep.subr.bf16.mxu0 0
      %619 = vmatpush1.bf16.xpose.msra.mxu0 0
      %620 = vmatprep.subr.bf16.mxu0 0
      %621 = vmatpush1.bf16.xpose.msra.mxu0 0
      %622 = vmatprep.subr.bf16.mxu0 0
      %623 = vmatpush1.bf16.xpose.msra.mxu0 0
      %624 = vmatprep.subr.bf16.mxu0 0
      %625 = vmatpush1.bf16.xpose.msra.mxu0 0
      %626 = vmatprep.subr.bf16.mxu0 0
      %627 = vmatpush1.bf16.xpose.msra.mxu0 0
      %628 = vmatprep.subr.bf16.mxu0 0
      %629 = vmatpush1.bf16.xpose.msra.mxu0 0
      %630 = vmatprep.subr.bf16.mxu0 0
      %631 = vmatpush1.bf16.xpose.msra.mxu0 0
      %632 = vmatprep.mubr.bf16.mxu0 0
      %633 = vmatmul.mubr.bf16.gmra.mrb[0].mxu0 %v595
      %v634 = vpop.f32.mrb[0].mxu0
      %v635 = vadd.f32 0.0, %v634
      %v636 = vpop.f32.mrb[0].mxu0
      %v637 = vpop.f32.mrb[0].mxu0
      %v638 = vpop.f32.mrb[0].mxu0
      %639 = vdwg.mxu0
      %v640 = vmul.f32 %v635, 0.35355338
      %v641 = vadd.f32 %v640, %v248
      %v642 = vsel %vm249, %v641, -inf
      %643 = vmax.xlane.f32.xlu0 %v642
      %v644 = vpop.xlane.xlu0 %643
      %v645 = vsub.f32 %v641, %v644
      %v646 = vmul.f32 %v645, 1.442695
      %v647 = vpow.pop %v646
      %v648 = vsel %vm249, %v647, 0.0
      %649 = vadd.xlane.f32.xlu0 %v648
      %v650 = vpop.xlane.xlu0 %649
      %v651 = vpack.c.bf16 %v647, %v647
      %652 = vrot.lane.b32.xlu0 %v427, 104
      %v653 = vpop.permute.xlu0 %652
      %v655 = vsel %vm249, %v651, 0
      %v658 = vsel %vm311, %v653, 0
      %660 = vmatprep.subr.bf16.mxu0 0
      %661 = vmatpush1.bf16.msra.mxu0 %v658
      %662 = vmatprep.subr.bf16.mxu0 0
      %663 = vmatpush1.bf16.msra.mxu0 0
      %664 = vmatprep.subr.bf16.mxu0 0
      %665 = vmatpush1.bf16.msra.mxu0 0
      %666 = vmatprep.subr.bf16.mxu0 0
      %667 = vmatpush1.bf16.msra.mxu0 0
      %668 = vmatprep.subr.bf16.mxu0 0
      %669 = vmatpush1.bf16.msra.mxu0 0
      %670 = vmatprep.subr.bf16.mxu0 0
      %671 = vmatpush1.bf16.msra.mxu0 0
      %672 = vmatprep.subr.bf16.mxu0 0
      %673 = vmatpush1.bf16.msra.mxu0 0
      %674 = vmatprep.subr.bf16.mxu0 0
      %675 = vmatpush1.bf16.msra.mxu0 0
      %676 = vmatprep.subr.bf16.mxu0 0
      %677 = vmatpush1.bf16.msra.mxu0 0
      %678 = vmatprep.subr.bf16.mxu0 0
      %679 = vmatpush1.bf16.msra.mxu0 0
      %680 = vmatprep.subr.bf16.mxu0 0
      %681 = vmatpush1.bf16.msra.mxu0 0
      %682 = vmatprep.subr.bf16.mxu0 0
      %683 = vmatpush1.bf16.msra.mxu0 0
      %684 = vmatprep.subr.bf16.mxu0 0
      %685 = vmatpush1.bf16.msra.mxu0 0
      %686 = vmatprep.subr.bf16.mxu0 0
      %687 = vmatpush1.bf16.msra.mxu0 0
      %688 = vmatprep.subr.bf16.mxu0 0
      %689 = vmatpush1.bf16.msra.mxu0 0
      %690 = vmatprep.subr.bf16.mxu0 0
      %691 = vmatpush1.bf16.msra.mxu0 0
      %692 = vmatprep.mubr.bf16.mxu0 0
      %693 = vmatmul.mubr.bf16.gmra.mrb[0].mxu0 %v655
      %v694 = vpop.f32.mrb[0].mxu0
      %v695 = vadd.f32 0.0, %v694
      %v696 = vpop.f32.mrb[0].mxu0
      %v697 = vpop.f32.mrb[0].mxu0
      %v698 = vpop.f32.mrb[0].mxu0
      %699 = vdwg.mxu0
      %v700 = vrcp.pop %v650
      %v701 = vmul.f32 %v695, %v700
      %703 = vrot.lane.b32.xlu0 %v477, 8
      %v704 = vpop.permute.xlu0 %703
      %707 = vrot.lane.b32.xlu0 %v589, 16
      %v708 = vpop.permute.xlu0 %707
      %711 = vrot.lane.b32.xlu0 %v701, 24
      %v712 = vpop.permute.xlu0 %711
      %v714 = vsel %vm249, %v356, %v704
      %vm715 = vcmask 130048
      %v716 = vsel %vm715, %v714, %v708
      %vm717 = vcmask 195584
      %v718 = vsel %vm717, %v716, %v712
      %vm719 = vcmask 261120
      %720 = vst.msk [vmem:[%s243] sm:$0xff] %vm719, %v718
      %p721 = scmp.lt.s32.totalorder %s15, 1
      %s722 = scalar_select %p721, %s15, 1
      %s723 = smul.addr %s722, 8
      %s724 = scalar_lea.vmem %s4, %s723
      // Predicated region
      $region37: #{dbart_forward.59} parent=35 // pred_check
        %p725 = pneg %p137
      $region38: #{dbart_forward.59} parent=35 // pred_check_branch
        %727 = sbr.rel (%p725) target = $region40
      $region39: #{dbart_forward.59} parent=35 // pred_region
        _
      $region40: #{dbart_forward.59} parent=35 // pred_fallthru
        _
    $region36: #{dbart_forward.59} parent=5 // pred_fallthru
      _
    %p728 = scmp.le.s32.totalorder 2, %s10
    // Predicated region
    $region41: #{dbart_forward.59} parent=5 // pred_check
      %p729 = pneg %p728
    $region42: #{dbart_forward.59} parent=5 // pred_check_branch
      %731 = sbr.rel (%p729) target = $region44
    $region43: #{dbart_forward.59} parent=5 // pred_region
      %s732 = ssub.s32 %s10, 2
      // Predicated region
      $region45: #{dbart_forward.59} parent=43 // pred_check
        %p733 = pneg %p143
      $region46: #{dbart_forward.59} parent=43 // pred_check_branch
        %735 = sbr.rel (%p733) target = $region48
      $region47: #{dbart_forward.59} parent=43 // pred_region
        %p736 = scmp.lt.s32.totalorder %s16, 1
        %s737 = scalar_select %p736, %s16, 1
        %s738 = smul.addr %s737, 8
        %s739 = scalar_lea.vmem %s4, %s738
      $region48: #{dbart_forward.59} parent=43 // pred_fallthru
        _
    $region44: #{dbart_forward.59} parent=5 // pred_fallthru
      _
  $region6: #{dbart_forward.59} parent=0 // loop_footer
    %s14 = sadd.s32 1, %s10
  $region7: #{dbart_forward.59} parent=0 // loop_footer_branch
    %9 = sbr.rel target = $region3
  $region8: #{dbart_forward.59} parent=0 // loop_exit
    _

// kernel: dbart_forward.47
$region0: #{dbart_forward.47}
  #allocation0 [shape = 'u32[]', space=smem, size = 0x4, offset = 0x4, fixed_abs, tag = 'smem constant byte address 0x4 - core index']
  #allocation1 [shape = 'u32[144,128]{1,0:T(1,128)}', space=vmem, size = 0x12000, scoped, tag = 'internal scratch']
  #allocation2 [shape = 'f32[16,128]{1,0:T(8,128)}', space=vmem, size = 0x2000, scoped, tag = 'scratch operand']
  %s0 = inlined_call_operand.vmem [shape: bf16[16,128], index: 0, kind: input, shape index: {}]
  %s1 = inlined_call_operand.vmem [shape: bf16[128,128], index: 1, kind: input, shape index: {}]
  %s2 = inlined_call_operand.vmem [shape: f32[1,128], index: 2, kind: input, shape index: {}]
  %s3 = inlined_call_operand.vmem [shape: f32[16,128], index: 3, kind: output, shape index: {}]
  %s4 = sld [smem:[#allocation0]]
  $region30: #{dbart_forward.47} parent=0
    _
  %s6 = ssub.s32 1, %s4
  %s7 = scalar_select 0, %s6, %s4
  // Predicated region
  $region2: #{dbart_forward.47} parent=0 // pred_check
    _
  $region3: #{dbart_forward.47} parent=0 // pred_check_branch
    %9 = sbr.rel (0) target = $region5
  $region4: #{dbart_forward.47} parent=0 // pred_region
    _
  $region5: #{dbart_forward.47} parent=0 // pred_fallthru
    _
  // Predicated region
  $region6: #{dbart_forward.47} parent=0 // pred_check
    _
  $region7: #{dbart_forward.47} parent=0 // pred_check_branch
    %11 = sbr.rel (0) target = $region9
  $region8: #{dbart_forward.47} parent=0 // pred_region
    _
  $region9: #{dbart_forward.47} parent=0 // pred_fallthru
    _
  // Predicated region
  $region10: #{dbart_forward.47} parent=0 // pred_check
    _
  $region11: #{dbart_forward.47} parent=0 // pred_check_branch
    %13 = sbr.rel (0) target = $region13
  $region12: #{dbart_forward.47} parent=0 // pred_region
    _
  $region13: #{dbart_forward.47} parent=0 // pred_fallthru
    _
  %p15 = scmp.eq.s32.totalorder 0, 0
  // Predicated region
  $region14: #{dbart_forward.47} parent=0 // pred_check
    %p16 = pneg %p15
  $region15: #{dbart_forward.47} parent=0 // pred_check_branch
    %18 = sbr.rel (%p16) target = $region17
  $region16: #{dbart_forward.47} parent=0 // pred_region
    %19 = vst [vmem:[#allocation2] sm:$0xff] 0.0
    %20 = vst [vmem:[#allocation2 + $0x8] sm:$0xff] 0.0
  $region17: #{dbart_forward.47} parent=0 // pred_fallthru
    _
  %v21 = vld [vmem:[%s0] sm:$0xf]
  %v22 = vld [vmem:[%s0 + $0x4] sm:$0xf]
  %v23 = vld [vmem:[%s1] sm:$0xf]
  %v24 = vld [vmem:[%s1 + $0x4] sm:$0xf]
  %v25 = vld [vmem:[%s1 + $0x8] sm:$0xf]
  %v26 = vld [vmem:[%s1 + $0xc] sm:$0xf]
  %v27 = vld [vmem:[%s1 + $0x10] sm:$0xf]
  %v28 = vld [vmem:[%s1 + $0x14] sm:$0xf]
  %v29 = vld [vmem:[%s1 + $0x18] sm:$0xf]
  %v30 = vld [vmem:[%s1 + $0x1c] sm:$0xf]
  %v31 = vld [vmem:[%s1 + $0x20] sm:$0xf]
  %v32 = vld [vmem:[%s1 + $0x24] sm:$0xf]
  %v33 = vld [vmem:[%s1 + $0x28] sm:$0xf]
  %v34 = vld [vmem:[%s1 + $0x2c] sm:$0xf]
  %v35 = vld [vmem:[%s1 + $0x30] sm:$0xf]
  %v36 = vld [vmem:[%s1 + $0x34] sm:$0xf]
  %v37 = vld [vmem:[%s1 + $0x38] sm:$0xf]
  %v38 = vld [vmem:[%s1 + $0x3c] sm:$0xf]
  %v39 = vld [vmem:[#allocation2] sm:$0xff]
  %v40 = vld [vmem:[#allocation2 + $0x8] sm:$0xff]
  %v43 = vunpack.c.l.b16 %v21
  %v44 = vunpack.c.l.b16 %v22
  %v45 = vpack.c.b16 %v44, %v43
  %v63 = vunpack.c.l.b16 %v23
  %v64 = vunpack.c.l.b16 %v24
  %v65 = vunpack.c.l.b16 %v25
  %v66 = vunpack.c.l.b16 %v26
  %v67 = vunpack.c.l.b16 %v27
  %v68 = vunpack.c.l.b16 %v28
  %v69 = vunpack.c.l.b16 %v29
  %v70 = vunpack.c.l.b16 %v30
  %v71 = vunpack.c.l.b16 %v31
  %v72 = vunpack.c.l.b16 %v32
  %v73 = vunpack.c.l.b16 %v33
  %v74 = vunpack.c.l.b16 %v34
  %v75 = vunpack.c.l.b16 %v35
  %v76 = vunpack.c.l.b16 %v36
  %v77 = vunpack.c.l.b16 %v37
  %v78 = vunpack.c.l.b16 %v38
  %v79 = vpack.c.b16 %v64, %v63
  %v80 = vpack.c.b16 %v66, %v65
  %v81 = vpack.c.b16 %v68, %v67
  %v82 = vpack.c.b16 %v70, %v69
  %v83 = vpack.c.b16 %v72, %v71
  %v84 = vpack.c.b16 %v74, %v73
  %v85 = vpack.c.b16 %v76, %v75
  %v86 = vpack.c.b16 %v78, %v77
  %95 = vmatprep.subr.bf16.mxu0 0
  %96 = vmatpush1.bf16.msra.mxu0 %v79
  %97 = vmatprep.subr.bf16.mxu0 0
  %98 = vmatpush1.bf16.msra.mxu0 %v80
  %99 = vmatprep.subr.bf16.mxu0 0
  %100 = vmatpush1.bf16.msra.mxu0 %v81
  %101 = vmatprep.subr.bf16.mxu0 0
  %102 = vmatpush1.bf16.msra.mxu0 %v82
  %103 = vmatprep.subr.bf16.mxu0 0
  %104 = vmatpush1.bf16.msra.mxu0 %v83
  %105 = vmatprep.subr.bf16.mxu0 0
  %106 = vmatpush1.bf16.msra.mxu0 %v84
  %107 = vmatprep.subr.bf16.mxu0 0
  %108 = vmatpush1.bf16.msra.mxu0 %v85
  %109 = vmatprep.subr.bf16.mxu0 0
  %110 = vmatpush1.bf16.msra.mxu0 %v86
  %111 = vmatprep.subr.bf16.mxu0 0
  %112 = vmatpush1.bf16.msra.mxu0 0
  %113 = vmatprep.subr.bf16.mxu0 0
  %114 = vmatpush1.bf16.msra.mxu0 0
  %115 = vmatprep.subr.bf16.mxu0 0
  %116 = vmatpush1.bf16.msra.mxu0 0
  %117 = vmatprep.subr.bf16.mxu0 0
  %118 = vmatpush1.bf16.msra.mxu0 0
  %119 = vmatprep.subr.bf16.mxu0 0
  %120 = vmatpush1.bf16.msra.mxu0 0
  %121 = vmatprep.subr.bf16.mxu0 0
  %122 = vmatpush1.bf16.msra.mxu0 0
  %123 = vmatprep.subr.bf16.mxu0 0
  %124 = vmatpush1.bf16.msra.mxu0 0
  %125 = vmatprep.subr.bf16.mxu0 0
  %126 = vmatpush1.bf16.msra.mxu0 0
  %127 = vmatprep.mubr.bf16.mxu0 0
  %128 = vmatmul.mubr.bf16.gmra.mrb[0].mxu0 %v45
  %v129 = vpop.f32.mrb[0].mxu0
  %v130 = vadd.f32 0.0, %v129
  %v131 = vpop.f32.mrb[0].mxu0
  %v132 = vpop.f32.mrb[0].mxu0
  %v133 = vadd.f32 0.0, %v132
  %v134 = vpop.f32.mrb[0].mxu0
  %135 = vdwg.mxu0
  %v136 = vadd.f32 %v39, %v130
  %v137 = vadd.f32 %v40, %v133
  %138 = vst [vmem:[#allocation2] sm:$0xff] %v136
  %139 = vst [vmem:[#allocation2 + $0x8] sm:$0xff] %v137
  // Predicated region
  $region18: #{dbart_forward.47} parent=0 // pred_check
    %p140 = pneg %p15
  $region19: #{dbart_forward.47} parent=0 // pred_check_branch
    %142 = sbr.rel (%p140) target = $region21
  $region20: #{dbart_forward.47} parent=0 // pred_region
    %v143 = vld [vmem:[#allocation2] sm:$0xff]
    %v144 = vld [vmem:[#allocation2 + $0x8] sm:$0xff]
    %v145 = vld [vmem:[%s2] sm:$0x1]
    %v147 = vlaneseq
    %v148 = vshrl.u32 %v147, 7
    %v149 = vsub.s32 0, %v148
    %v150 = vrot.slane %v145, %v149
    %v152 = vadd.f32 %v143, %v150
    %v153 = vadd.f32 %v144, %v150
    %v154 = vmul.f32 %v152, %v152
    %v155 = vmul.f32 %v153, %v153
    %v156 = vmul.f32 %v152, %v154
    %v157 = vmul.f32 %v153, %v155
    %v158 = vmul.f32 %v156, 0.044715
    %v159 = vmul.f32 %v157, 0.044715
    %v160 = vadd.f32 %v152, %v158
    %v161 = vadd.f32 %v153, %v159
    %v162 = vmul.f32 %v160, 0.7978846
    %v163 = vmul.f32 %v161, 0.7978846
    %v164 = vtanh.pop %v162
    %v165 = vtanh.pop %v163
    %v166 = vadd.f32 %v164, 1.0
    %v167 = vadd.f32 %v165, 1.0
    %v168 = vmul.f32 %v166, 0.5
    %v169 = vmul.f32 %v167, 0.5
    %v170 = vmul.f32 %v152, %v168
    %v171 = vmul.f32 %v153, %v169
    %172 = vst [vmem:[%s3] sm:$0xff] %v170
    %173 = vst [vmem:[%s3 + $0x8] sm:$0xff] %v171
  $region21: #{dbart_forward.47} parent=0 // pred_fallthru
    _
  // Predicated region
  $region22: #{dbart_forward.47} parent=0 // pred_check
    _
  $region23: #{dbart_forward.47} parent=0 // pred_check_branch
    %175 = sbr.rel (0) target = $region25
  $region24: #{dbart_forward.47} parent=0 // pred_region
    _
  $region25: #{dbart_forward.47} parent=0 // pred_fallthru
    _
  // Predicated region
  $region26: #{dbart_forward.47} parent=0 // pred_check
    _
  $region27: #{dbart_forward.47} parent=0 // pred_check_branch
    %177 = sbr.rel (0) target = $region29
  $region28: #{dbart_forward.47} parent=0 // pred_region
    _
  $region29: #{dbart_forward.47} parent=0 // pred_fallthru
    _

// kernel: dbart_forward.82
$region0: #{dbart_forward.82}
  #allocation0 [shape = 'u32[]', space=smem, size = 0x4, offset = 0x4, fixed_abs, tag = 'smem constant byte address 0x4 - core index']
  #allocation1 [shape = 'u32[144,128]{1,0:T(1,128)}', space=vmem, size = 0x12000, scoped, tag = 'internal scratch']
  #allocation2 [shape = 'f32[16,128]{1,0:T(8,128)}', space=vmem, size = 0x2000, scoped, tag = 'scratch operand']
  %s0 = inlined_call_operand.vmem [shape: bf16[16,128], index: 0, kind: input, shape index: {}]
  %s1 = inlined_call_operand.vmem [shape: bf16[128,128], index: 1, kind: input, shape index: {}]
  %s2 = inlined_call_operand.vmem [shape: f32[16,128], index: 2, kind: output, shape index: {}]
  %s3 = sld [smem:[#allocation0]]
  $region26: #{dbart_forward.82} parent=0
    _
  %s5 = ssub.s32 1, %s3
  %s6 = scalar_select 0, %s5, %s3
  // Predicated region
  $region2: #{dbart_forward.82} parent=0 // pred_check
    _
  $region3: #{dbart_forward.82} parent=0 // pred_check_branch
    %8 = sbr.rel (0) target = $region5
  $region4: #{dbart_forward.82} parent=0 // pred_region
    _
  $region5: #{dbart_forward.82} parent=0 // pred_fallthru
    _
  // Predicated region
  $region6: #{dbart_forward.82} parent=0 // pred_check
    _
  $region7: #{dbart_forward.82} parent=0 // pred_check_branch
    %10 = sbr.rel (0) target = $region9
  $region8: #{dbart_forward.82} parent=0 // pred_region
    _
  $region9: #{dbart_forward.82} parent=0 // pred_fallthru
    _
  %p12 = scmp.eq.s32.totalorder 0, 0
  // Predicated region
  $region10: #{dbart_forward.82} parent=0 // pred_check
    %p13 = pneg %p12
  $region11: #{dbart_forward.82} parent=0 // pred_check_branch
    %15 = sbr.rel (%p13) target = $region13
  $region12: #{dbart_forward.82} parent=0 // pred_region
    %16 = vst [vmem:[#allocation2] sm:$0xff] 0.0
    %17 = vst [vmem:[#allocation2 + $0x8] sm:$0xff] 0.0
  $region13: #{dbart_forward.82} parent=0 // pred_fallthru
    _
  %v18 = vld [vmem:[%s0] sm:$0xf]
  %v19 = vld [vmem:[%s0 + $0x4] sm:$0xf]
  %v20 = vld [vmem:[%s1] sm:$0xf]
  %v21 = vld [vmem:[%s1 + $0x4] sm:$0xf]
  %v22 = vld [vmem:[%s1 + $0x8] sm:$0xf]
  %v23 = vld [vmem:[%s1 + $0xc] sm:$0xf]
  %v24 = vld [vmem:[%s1 + $0x10] sm:$0xf]
  %v25 = vld [vmem:[%s1 + $0x14] sm:$0xf]
  %v26 = vld [vmem:[%s1 + $0x18] sm:$0xf]
  %v27 = vld [vmem:[%s1 + $0x1c] sm:$0xf]
  %v28 = vld [vmem:[%s1 + $0x20] sm:$0xf]
  %v29 = vld [vmem:[%s1 + $0x24] sm:$0xf]
  %v30 = vld [vmem:[%s1 + $0x28] sm:$0xf]
  %v31 = vld [vmem:[%s1 + $0x2c] sm:$0xf]
  %v32 = vld [vmem:[%s1 + $0x30] sm:$0xf]
  %v33 = vld [vmem:[%s1 + $0x34] sm:$0xf]
  %v34 = vld [vmem:[%s1 + $0x38] sm:$0xf]
  %v35 = vld [vmem:[%s1 + $0x3c] sm:$0xf]
  %v36 = vld [vmem:[#allocation2] sm:$0xff]
  %v37 = vld [vmem:[#allocation2 + $0x8] sm:$0xff]
  %v40 = vunpack.c.l.b16 %v18
  %v41 = vunpack.c.l.b16 %v19
  %v42 = vpack.c.b16 %v41, %v40
  %v60 = vunpack.c.l.b16 %v20
  %v61 = vunpack.c.l.b16 %v21
  %v62 = vunpack.c.l.b16 %v22
  %v63 = vunpack.c.l.b16 %v23
  %v64 = vunpack.c.l.b16 %v24
  %v65 = vunpack.c.l.b16 %v25
  %v66 = vunpack.c.l.b16 %v26
  %v67 = vunpack.c.l.b16 %v27
  %v68 = vunpack.c.l.b16 %v28
  %v69 = vunpack.c.l.b16 %v29
  %v70 = vunpack.c.l.b16 %v30
  %v71 = vunpack.c.l.b16 %v31
  %v72 = vunpack.c.l.b16 %v32
  %v73 = vunpack.c.l.b16 %v33
  %v74 = vunpack.c.l.b16 %v34
  %v75 = vunpack.c.l.b16 %v35
  %v76 = vpack.c.b16 %v61, %v60
  %v77 = vpack.c.b16 %v63, %v62
  %v78 = vpack.c.b16 %v65, %v64
  %v79 = vpack.c.b16 %v67, %v66
  %v80 = vpack.c.b16 %v69, %v68
  %v81 = vpack.c.b16 %v71, %v70
  %v82 = vpack.c.b16 %v73, %v72
  %v83 = vpack.c.b16 %v75, %v74
  %92 = vmatprep.subr.bf16.mxu0 0
  %93 = vmatpush1.bf16.xpose.msra.mxu0 %v76
  %94 = vmatprep.subr.bf16.mxu0 0
  %95 = vmatpush1.bf16.xpose.msra.mxu0 %v77
  %96 = vmatprep.subr.bf16.mxu0 0
  %97 = vmatpush1.bf16.xpose.msra.mxu0 %v78
  %98 = vmatprep.subr.bf16.mxu0 0
  %99 = vmatpush1.bf16.xpose.msra.mxu0 %v79
  %100 = vmatprep.subr.bf16.mxu0 0
  %101 = vmatpush1.bf16.xpose.msra.mxu0 %v80
  %102 = vmatprep.subr.bf16.mxu0 0
  %103 = vmatpush1.bf16.xpose.msra.mxu0 %v81
  %104 = vmatprep.subr.bf16.mxu0 0
  %105 = vmatpush1.bf16.xpose.msra.mxu0 %v82
  %106 = vmatprep.subr.bf16.mxu0 0
  %107 = vmatpush1.bf16.xpose.msra.mxu0 %v83
  %108 = vmatprep.subr.bf16.mxu0 0
  %109 = vmatpush1.bf16.xpose.msra.mxu0 0
  %110 = vmatprep.subr.bf16.mxu0 0
  %111 = vmatpush1.bf16.xpose.msra.mxu0 0
  %112 = vmatprep.subr.bf16.mxu0 0
  %113 = vmatpush1.bf16.xpose.msra.mxu0 0
  %114 = vmatprep.subr.bf16.mxu0 0
  %115 = vmatpush1.bf16.xpose.msra.mxu0 0
  %116 = vmatprep.subr.bf16.mxu0 0
  %117 = vmatpush1.bf16.xpose.msra.mxu0 0
  %118 = vmatprep.subr.bf16.mxu0 0
  %119 = vmatpush1.bf16.xpose.msra.mxu0 0
  %120 = vmatprep.subr.bf16.mxu0 0
  %121 = vmatpush1.bf16.xpose.msra.mxu0 0
  %122 = vmatprep.subr.bf16.mxu0 0
  %123 = vmatpush1.bf16.xpose.msra.mxu0 0
  %124 = vmatprep.mubr.bf16.mxu0 0
  %125 = vmatmul.mubr.bf16.gmra.mrb[0].mxu0 %v42
  %v126 = vpop.f32.mrb[0].mxu0
  %v127 = vadd.f32 0.0, %v126
  %v128 = vpop.f32.mrb[0].mxu0
  %v129 = vpop.f32.mrb[0].mxu0
  %v130 = vadd.f32 0.0, %v129
  %v131 = vpop.f32.mrb[0].mxu0
  %132 = vdwg.mxu0
  %v133 = vadd.f32 %v36, %v127
  %v134 = vadd.f32 %v37, %v130
  %135 = vst [vmem:[#allocation2] sm:$0xff] %v133
  %136 = vst [vmem:[#allocation2 + $0x8] sm:$0xff] %v134
  // Predicated region
  $region14: #{dbart_forward.82} parent=0 // pred_check
    %p137 = pneg %p12
  $region15: #{dbart_forward.82} parent=0 // pred_check_branch
    %139 = sbr.rel (%p137) target = $region17
  $region16: #{dbart_forward.82} parent=0 // pred_region
    %v140 = vld [vmem:[#allocation2] sm:$0xff]
    %v141 = vld [vmem:[#allocation2 + $0x8] sm:$0xff]
    %142 = vst [vmem:[%s2] sm:$0xff] %v140
    %143 = vst [vmem:[%s2 + $0x8] sm:$0xff] %v141
  $region17: #{dbart_forward.82} parent=0 // pred_fallthru
    _
  // Predicated region
  $region18: #{dbart_forward.82} parent=0 // pred_check
    _
  $region19: #{dbart_forward.82} parent=0 // pred_check_branch
    %145 = sbr.rel (0) target = $region21
  $region20: #{dbart_forward.82} parent=0 // pred_region
    _
  $region21: #{dbart_forward.82} parent=0 // pred_fallthru
    _
  // Predicated region
  $region22: #{dbart_forward.82} parent=0 // pred_check
    _
  $region23: #{dbart_forward.82} parent=0 // pred_check_branch
    %147 = sbr.rel (0) target = $region25
  $region24: #{dbart_forward.82} parent=0 // pred_region
    _
  $region25: #{dbart_forward.82} parent=0 // pred_fallthru
    _

// kernel: dbart_forward.83
$region0: #{dbart_forward.83}
  #allocation0 [shape = 'u32[]', space=smem, size = 0x4, offset = 0x4, fixed_abs, tag = 'smem constant byte address 0x4 - core index']
  #allocation1 [shape = 'u32[144,128]{1,0:T(1,128)}', space=vmem, size = 0x12000, scoped, tag = 'internal scratch']
  #allocation2 [shape = 'f32[16,1]{1,0:T(8,128)}', space=vmem, size = 0x2000, scoped, tag = 'scratch operand']
  #allocation3 [shape = 'f32[16,1]{1,0:T(8,128)}', space=vmem, size = 0x2000, scoped, tag = 'scratch operand']
  #allocation4 [shape = 'f32[16,1]{1,0:T(8,128)}', space=vmem, size = 0x2000, scoped, tag = 'scratch operand']
  #allocation5 [shape = 'f32[16,1]{1,0:T(8,128)}', space=vmem, size = 0x2000, scoped, tag = 'scratch operand']
  #allocation6 [shape = 'f32[16,1]{1,0:T(8,128)}', space=vmem, size = 0x2000, scoped, tag = 'scratch operand']
  #allocation7 [shape = 'f32[16,1]{1,0:T(8,128)}', space=vmem, size = 0x2000, scoped, tag = 'scratch operand']
  %s0 = inlined_call_operand.vmem [shape: s32[16,1], index: 0, kind: input, shape index: {}]
  %s1 = inlined_call_operand.vmem [shape: f32[16,128], index: 1, kind: input, shape index: {}]
  %s2 = inlined_call_operand.hbm [shape: f32[1,1], index: 2, kind: output, shape index: {0}]
  %s3 = inlined_call_operand.hbm [shape: f32[1,1], index: 3, kind: output, shape index: {1}]
  %4 = xla_tuple %s2, %s3
  %s5 = sld [smem:[#allocation0]]
  $region34: #{dbart_forward.83} parent=0
    _
  %s7 = ssub.s32 1, %s5
  %s8 = scalar_select 0, %s7, %s5
  $region1: #{dbart_forward.83} parent=0
    #allocation8 [shape = 'u8[512]{0}', space=vmem, size = 0x400, scoped, tag = 'output window, operand 0, single buffered']
    #allocation9 [shape = 's32[1]{0}', space=sflag, size = 0x4, scoped, tag = 'scoped memory for dbart_forward.83']
    #allocation10 [shape = 'u8[512]{0}', space=vmem, size = 0x400, scoped, tag = 'output window, operand 1, single buffered']
    #allocation11 [shape = 's32[1]{0}', space=sflag, size = 0x4, scoped, tag = 'scoped memory for dbart_forward.83']
    %9 = vsyncpa [#allocation9], 0
    %10 = vsyncpa [#allocation11], 0
    // Predicated region
    $region2: #{dbart_forward.83} parent=1 // pred_check
      _
    $region3: #{dbart_forward.83} parent=1 // pred_check_branch
      %12 = sbr.rel (0) target = $region5
    $region4: #{dbart_forward.83} parent=1 // pred_region
      _
    $region5: #{dbart_forward.83} parent=1 // pred_fallthru
      _
    // Predicated region
    $region6: #{dbart_forward.83} parent=1 // pred_check
      _
    $region7: #{dbart_forward.83} parent=1 // pred_check_branch
      %14 = sbr.rel (0) target = $region9
    $region8: #{dbart_forward.83} parent=1 // pred_region
      _
    $region9: #{dbart_forward.83} parent=1 // pred_fallthru
      _
    %p15 = scmp.eq.s32.totalorder 0, 0
    // Predicated region
    $region10: #{dbart_forward.83} parent=1 // pred_check
      %p16 = pneg %p15
    $region11: #{dbart_forward.83} parent=1 // pred_check_branch
      %18 = sbr.rel (%p16) target = $region13
    $region12: #{dbart_forward.83} parent=1 // pred_region
      %vm19 = vcmask 7168
      %20 = vst.msk [vmem:[#allocation2] sm:$0xff] %vm19, -1e+30
      %21 = vst.msk [vmem:[#allocation2 + $0x8] sm:$0xff] %vm19, -1e+30
      %22 = vst.msk [vmem:[#allocation3] sm:$0xff] %vm19, 0.0
      %23 = vst.msk [vmem:[#allocation3 + $0x8] sm:$0xff] %vm19, 0.0
      %24 = vst.msk [vmem:[#allocation4] sm:$0xff] %vm19, 0.0
      %25 = vst.msk [vmem:[#allocation4 + $0x8] sm:$0xff] %vm19, 0.0
      %26 = vst.msk [vmem:[#allocation5] sm:$0xff] %vm19, 0.0
      %27 = vst.msk [vmem:[#allocation5 + $0x8] sm:$0xff] %vm19, 0.0
      %28 = vst.msk [vmem:[#allocation6] sm:$0xff] %vm19, -1e+30
      %29 = vst.msk [vmem:[#allocation6 + $0x8] sm:$0xff] %vm19, -1e+30
      %30 = vst.msk [vmem:[#allocation7] sm:$0xff] %vm19, -1.0
      %31 = vst.msk [vmem:[#allocation7 + $0x8] sm:$0xff] %vm19, -1.0
    $region13: #{dbart_forward.83} parent=1 // pred_fallthru
      _
    %v32 = vld [vmem:[%s1] sm:$0xff]
    %v33 = vld [vmem:[%s1 + $0x8] sm:$0xff]
    %v34 = vld [vmem:[%s0] sm:$0xff]
    %v35 = vld [vmem:[%s0 + $0x8] sm:$0xff]
    %v36 = vlaneseq
    %v37 = vand.u32 %v36, 127
    %s38 = smul.u32 0, 128
    %v39 = vstv %s38
    %v40 = vadd.s32 %v37, %v39
    %vm41 = vcmp.lt.s32.totalorder %v40, 128
    %v42 = vsel %vm41, %v32, -1e+30
    %v43 = vsel %vm41, %v33, -1e+30
    %44 = vmax.xlane.f32.xlu0 %v42
    %v45 = vpop.xlane.xlu0 %44
    %46 = vmax.xlane.f32.xlu0 %v43
    %v47 = vpop.xlane.xlu0 %46
    %v48 = vld [vmem:[#allocation2] sm:$0xff]
    %v49 = vld [vmem:[#allocation2 + $0x8] sm:$0xff]
    %v50 = vmax.f32 %v48, %v45
    %v51 = vmax.f32 %v49, %v47
    %v52 = vld [vmem:[#allocation3] sm:$0xff]
    %v53 = vld [vmem:[#allocation3 + $0x8] sm:$0xff]
    %v54 = vsub.f32 %v48, %v50
    %v55 = vsub.f32 %v49, %v51
    %v56 = vmul.f32 %v54, 1.442695
    %v57 = vpow.pop %v56
    %v58 = vmul.f32 %v55, 1.442695
    %v59 = vpow.pop %v58
    %v60 = vmul.f32 %v52, %v57
    %v61 = vmul.f32 %v53, %v59
    %63 = vset.pattern.permute.xlu0 0
    %64 = vperm.xlu0 %63, %v50
    %v65 = vpop.permute.xlu0 %64
    %68 = vset.pattern.permute.xlu0 0
    %69 = vperm.xlu0 %68, %v51
    %v70 = vpop.permute.xlu0 %69
    %v72 = vsub.f32 %v42, %v65
    %v73 = vsub.f32 %v43, %v70
    %v74 = vmul.f32 %v72, 1.442695
    %v75 = vpow.pop %v74
    %v76 = vmul.f32 %v73, 1.442695
    %v77 = vpow.pop %v76
    %78 = vadd.xlane.f32.xlu0 %v75
    %v79 = vpop.xlane.xlu0 %78
    %80 = vadd.xlane.f32.xlu0 %v77
    %v81 = vpop.xlane.xlu0 %80
    %v82 = vadd.f32 %v60, %v79
    %v83 = vadd.f32 %v61, %v81
    %vm84 = vcmask 7168
    %85 = vst.msk [vmem:[#allocation3] sm:$0xff] %vm84, %v82
    %86 = vst.msk [vmem:[#allocation3 + $0x8] sm:$0xff] %vm84, %v83
    %87 = vst.msk [vmem:[#allocation2] sm:$0xff] %vm84, %v50
    %88 = vst.msk [vmem:[#allocation2 + $0x8] sm:$0xff] %vm84, %v51
    %v89 = vld [vmem:[#allocation4] sm:$0xff]
    %v90 = vld [vmem:[#allocation4 + $0x8] sm:$0xff]
    %v91 = vsel %vm41, %v32, 0.0
    %v92 = vsel %vm41, %v33, 0.0
    %93 = vadd.xlane.f32.xlu0 %v91
    %v94 = vpop.xlane.xlu0 %93
    %95 = vadd.xlane.f32.xlu0 %v92
    %v96 = vpop.xlane.xlu0 %95
    %v97 = vadd.f32 %v89, %v94
    %v98 = vadd.f32 %v90, %v96
    %99 = vst.msk [vmem:[#allocation4] sm:$0xff] %vm84, %v97
    %100 = vst.msk [vmem:[#allocation4 + $0x8] sm:$0xff] %vm84, %v98
    %101 = vset.pattern.permute.xlu0 0
    %102 = vperm.xlu0 %101, %v34
    %v103 = vpop.permute.xlu0 %102
    %104 = vset.pattern.permute.xlu0 0
    %105 = vperm.xlu0 %104, %v35
    %v106 = vpop.permute.xlu0 %105
    %vm107 = vcmp.eq.s32.totalorder %v40, %v103
    %vm108 = vcmp.eq.s32.totalorder %v40, %v106
    %vm109 = vmand %vm107, %vm41
    %vm110 = vmand %vm108, %vm41
    %v111 = vld [vmem:[#allocation5] sm:$0xff]
    %v112 = vld [vmem:[#allocation5 + $0x8] sm:$0xff]
    %v113 = vsel %vm109, %v32, 0.0
    %v114 = vsel %vm110, %v33, 0.0
    %115 = vadd.xlane.f32.xlu0 %v113
    %v116 = vpop.xlane.xlu0 %115
    %117 = vadd.xlane.f32.xlu0 %v114
    %v118 = vpop.xlane.xlu0 %117
    %v119 = vadd.f32 %v111, %v116
    %v120 = vadd.f32 %v112, %v118
    %121 = vst.msk [vmem:[#allocation5] sm:$0xff] %vm84, %v119
    %122 = vst.msk [vmem:[#allocation5 + $0x8] sm:$0xff] %vm84, %v120
    %v123 = vcvt.s32.f32 %v40
    %vm124 = vcmp.eq.f32.partialorder %v42, %v45
    %vm125 = vcmp.eq.f32.partialorder %v43, %v47
    %v126 = vsel %vm124, %v123, 1e+30
    %v127 = vsel %vm125, %v123, 1e+30
    %128 = vmin.xlane.f32.xlu0 %v126
    %v129 = vpop.xlane.xlu0 %128
    %130 = vmin.xlane.f32.xlu0 %v127
    %v131 = vpop.xlane.xlu0 %130
    %v132 = vld [vmem:[#allocation6] sm:$0xff]
    %v133 = vld [vmem:[#allocation6 + $0x8] sm:$0xff]
    %vm134 = vcmp.gt.f32.partialorder %v45, %v132
    %vm135 = vcmp.gt.f32.partialorder %v47, %v133
    %v136 = vld [vmem:[#allocation7] sm:$0xff]
    %v137 = vld [vmem:[#allocation7 + $0x8] sm:$0xff]
    %v138 = vsel %vm134, %v129, %v136
    %v139 = vsel %vm135, %v131, %v137
    %140 = vst.msk [vmem:[#allocation7] sm:$0xff] %vm84, %v138
    %141 = vst.msk [vmem:[#allocation7 + $0x8] sm:$0xff] %vm84, %v139
    %v142 = vld [vmem:[#allocation6] sm:$0xff]
    %v143 = vld [vmem:[#allocation6 + $0x8] sm:$0xff]
    %v144 = vsel %vm134, %v45, %v142
    %v145 = vsel %vm135, %v47, %v143
    %146 = vst.msk [vmem:[#allocation6] sm:$0xff] %vm84, %v144
    %147 = vst.msk [vmem:[#allocation6 + $0x8] sm:$0xff] %vm84, %v145
    // Predicated region
    $region14: #{dbart_forward.83} parent=1 // pred_check
      %p148 = pneg %p15
    $region15: #{dbart_forward.83} parent=1 // pred_check_branch
      %150 = sbr.rel (%p148) target = $region17
    $region16: #{dbart_forward.83} parent=1 // pred_region
      %v151 = vld [vmem:[#allocation2] sm:$0xff]
      %v152 = vld [vmem:[#allocation2 + $0x8] sm:$0xff]
      %v153 = vld [vmem:[#allocation3] sm:$0xff]
      %v154 = vld [vmem:[#allocation3 + $0x8] sm:$0xff]
      %v155 = vlog2.pop %v153
      %v156 = vmul.f32 %v155, 0.6931472
      %v157 = vlog2.pop %v154
      %v158 = vmul.f32 %v157, 0.6931472
      %v159 = vadd.f32 %v151, %v156
      %v160 = vadd.f32 %v152, %v158
      %v161 = vld [vmem:[#allocation5] sm:$0xff]
      %v162 = vld [vmem:[#allocation5 + $0x8] sm:$0xff]
      %v163 = vsub.f32 %v159, %v161
      %v164 = vsub.f32 %v160, %v162
      %v165 = vld [vmem:[#allocation4] sm:$0xff]
      %v166 = vld [vmem:[#allocation4 + $0x8] sm:$0xff]
      %v167 = vrcp.pop 128.0
      %v168 = vmul.f32 %v165, %v167
      %v169 = vmul.f32 %v166, %v167
      %v170 = vsub.f32 %v159, %v168
      %v171 = vsub.f32 %v160, %v169
      %v172 = vmul.f32 %v163, 0.9
      %v173 = vmul.f32 %v164, 0.9
      %v174 = vmul.f32 %v170, 0.1
      %v175 = vmul.f32 %v171, 0.1
      %v176 = vadd.f32 %v172, %v174
      %v177 = vadd.f32 %v173, %v175
      %v178 = vlaneseq
      %v179 = vshrl.u32 %v178, 7
      %v180 = vadd.s32 %v179, 8
      %vm181 = vcmp.lt.s32.totalorder %v179, 16
      %vm182 = vcmp.lt.s32.totalorder %v180, 16
      %v183 = vsel %vm181, 1, 0
      %v184 = vsel %vm182, 1, 0
      %v185 = vcvt.s32.f32 %v183
      %v186 = vcvt.s32.f32 %v184
      %v187 = vmul.f32 %v176, %v185
      %v188 = vmul.f32 %v177, %v186
      %v189 = vsel %vm84, %v187, 0.0
      %v190 = vsel %vm84, %v188, 0.0
      %v191 = vadd.f32 %v189, %v190
      %v192 = vrot.slane %v191, 4
      %v193 = vadd.f32 %v191, %v192
      %v194 = vrot.slane %v193, 2
      %v195 = vadd.f32 %v193, %v194
      %v196 = vrot.slane %v195, 1
      %v197 = vadd.f32 %v195, %v196
      %v198 = vmul.f32 %v197, 0.0625
      %vm199 = vcmask 0
      %200 = vst.msk [vmem:[#allocation8] sm:$0x1] %vm199, %v198
      %v201 = vld [vmem:[#allocation7] sm:$0xff]
      %v202 = vld [vmem:[#allocation7 + $0x8] sm:$0xff]
      %v203 = vcvt.s32.f32 %v34
      %v204 = vcvt.s32.f32 %v35
      %vm205 = vcmp.eq.f32.partialorder %v201, %v203
      %vm206 = vcmp.eq.f32.partialorder %v202, %v204
      %v207 = vsel %vm205, 1, 0
      %v208 = vsel %vm206, 1, 0
      %v209 = vcvt.s32.f32 %v207
      %v210 = vcvt.s32.f32 %v208
      %v211 = vmul.f32 %v209, %v185
      %v212 = vmul.f32 %v210, %v186
      %v213 = vsel %vm84, %v211, 0.0
      %v214 = vsel %vm84, %v212, 0.0
      %v215 = vadd.f32 %v213, %v214
      %v216 = vrot.slane %v215, 4
      %v217 = vadd.f32 %v215, %v216
      %v218 = vrot.slane %v217, 2
      %v219 = vadd.f32 %v217, %v218
      %v220 = vrot.slane %v219, 1
      %v221 = vadd.f32 %v219, %v220
      %v222 = vmul.f32 %v221, 0.0625
      %223 = vst.msk [vmem:[#allocation10] sm:$0x1] %vm199, %v222
    $region17: #{dbart_forward.83} parent=1 // pred_fallthru
      _
    // Predicated region
    $region18: #{dbart_forward.83} parent=1 // pred_check
      _
    $region19: #{dbart_forward.83} parent=1 // pred_check_branch
      %225 = sbr.rel (0) target = $region21
    $region20: #{dbart_forward.83} parent=1 // pred_region
      %s227 = ssub.s32 16, 16
      %228 = vsyncadd [#allocation9], %s227
      %s230 = sshll.u32 [#allocation8], 4
      %s231 = int_to_ptr.vmem [resolvable:$true] %s230
      %233 = dma.vmem_to_hbm [thread:$0]  %s231, 16, %s2, [#allocation9]
    $region21: #{dbart_forward.83} parent=1 // pred_fallthru
      _
    // Predicated region
    $region22: #{dbart_forward.83} parent=1 // pred_check
      _
    $region23: #{dbart_forward.83} parent=1 // pred_check_branch
      %235 = sbr.rel (0) target = $region25
    $region24: #{dbart_forward.83} parent=1 // pred_region
      %s237 = ssub.s32 16, 16
      %238 = vsyncadd [#allocation11], %s237
      %s240 = sshll.u32 [#allocation10], 4
      %s241 = int_to_ptr.vmem [resolvable:$true] %s240
      %243 = dma.vmem_to_hbm [thread:$0]  %s241, 16, %s3, [#allocation11]
    $region25: #{dbart_forward.83} parent=1 // pred_fallthru
      _
    // Predicated region
    $region26: #{dbart_forward.83} parent=1 // pred_check
      _
    $region27: #{dbart_forward.83} parent=1 // pred_check_branch
      %245 = sbr.rel (0) target = $region29
    $region28: #{dbart_forward.83} parent=1 // pred_region
      %246 = dma.done [#allocation9], 16
    $region29: #{dbart_forward.83} parent=1 // pred_fallthru
      _
    // Predicated region
    $region30: #{dbart_forward.83} parent=1 // pred_check
      _
    $region31: #{dbart_forward.83} parent=1 // pred_check_branch
      %248 = sbr.rel (0) target = $region33
    $region32: #{dbart_forward.83} parent=1 // pred_region
      %249 = dma.done [#allocation11], 16
    $region33: #{dbart_forward.83} parent=1 // pred_fallthru
      _
    %250 = vsyncpa [#allocation9], 1
    %251 = vsyncpa [#allocation11], 1

</llo_original>
